<compile_context>
chip_gen: v7x
topology: tpu7x:2x2x1
jax: 0.10.0
libtpu: 0.0.40
codegen_flags: <defaults>
</compile_context>

<pallas_src>
import functools
import math

import numpy as np
import jax
import jax.numpy as jnp
from jax.experimental import pallas as pl
from jax.experimental.pallas import tpu as pltpu


def _mha_tile_kernel(x_ref, wqkv_ref, bqkv_ref, wo_ref, bo_ref, out_ref, *rest,
                     num_heads, seq_len, embed_dim, need_weights):
    if need_weights:
        attn_ref, qkv_sc, o_sc = rest
    else:
        qkv_sc, o_sc = rest
        attn_ref = None

    L = seq_len
    D = embed_dim
    H = num_heads
    Dh = D // H
    N = x_ref.shape[0]            # rows in this tile = bt * L
    Bt = N // L
    cdt = qkv_sc.dtype            # MXU-input dtype (f32 or bf16)
    use_approx = cdt != jnp.float32  # EUP approx reciprocal only on the low-prec path

    x = x_ref[...]                                                  # (N, D)
    # Fused QKV projection for the whole row tile (single full-K MXU matmul, f32
    # accumulation).  The 1/sqrt(Dh) scale is baked into the Q columns in the wrapper.
    qkv = jnp.dot(x, wqkv_ref[0], preferred_element_type=jnp.float32) + bqkv_ref[0]
    qkv_sc[...] = qkv.astype(cdt)   # park in VMEM scratch -> bounds vreg live range

    if need_weights:
        attn_sum = jnp.zeros((N, L), jnp.float32)                   # lane-dense slab

    for h in range(H):
        base = 3 * Dh * h            # head-major column order (permuted in wrapper)
        blk = qkv_sc[:, base:base + 3 * Dh]                         # (N, 3*Dh) cdt
        qh = blk[:, 0:Dh].reshape(Bt, L, Dh)
        kh = blk[:, Dh:2 * Dh].reshape(Bt, L, Dh)
        vh = blk[:, 2 * Dh:3 * Dh].reshape(Bt, L, Dh)

        # scores for all bt sequences of this head at once (scale already in q)
        s = jnp.einsum("bld,bmd->blm", qh, kh,
                       preferred_element_type=jnp.float32)          # (Bt, L, L) f32

        # numerically stable softmax; reciprocal-multiply instead of divide
        m = jnp.max(s, axis=-1, keepdims=True)
        e = jnp.exp(s - m)
        denom = jnp.sum(e, axis=-1, keepdims=True)
        p = e * pl.reciprocal(denom, approx=use_approx)             # (Bt, L, L)
        if need_weights:
            attn_sum = attn_sum + p.reshape(N, L)

        oh = jnp.einsum("blm,bmd->bld", p.astype(cdt), vh,
                        preferred_element_type=jnp.float32)         # (Bt, L, Dh)
        # stash per-head output at its lane offset; single full-K projection later
        o_sc[:, h * Dh:(h + 1) * Dh] = oh.reshape(N, Dh).astype(cdt)

    # ONE full-K (K = D) output projection after the head loop.
    out = jnp.dot(o_sc[...], wo_ref[0], preferred_element_type=jnp.float32) + bo_ref[0]
    out_ref[...] = out.astype(out_ref.dtype)
    if need_weights:
        attn_ref[...] = (attn_sum * (1.0 / H)).astype(attn_ref.dtype)   # head average


def parallel_multihead_attention(x, in_proj_w, in_proj_b, out_proj_w, out_proj_b,
                                 *, num_heads, num_experts, compute_dtype=None,
                                 need_weights=True, target_rows=512):
    """x: (B_total, L, D) with B_total = num_experts * batch_per_expert.

    Weights in PyTorch layout.  They may be passed either
      * un-batched  (3D, D) / (3D,) / (D, D) / (D,)   -> shared (deepcopy) weights,
        kept resident in VMEM across all grid steps, or
      * expert-batched with leading dim num_experts (or 1).
    compute_dtype: optional MXU-input dtype (bf16 is beneficial on v5e/v6e/v7x);
    accumulation and softmax always stay in f32.
    """
    B, L, D = x.shape
    E = num_experts
    H = num_heads
    assert B % E == 0 and D % H == 0
    bpe = B // E
    Dh = D // H
    threeD = 3 * D
    out_dtype = x.dtype
    scale = 1.0 / math.sqrt(Dh)
    cdt = jnp.dtype(compute_dtype) if compute_dtype is not None else jnp.dtype(jnp.float32)

    # --- normalize parameter shapes (shared weights keep leading dim 1) -------------
    def _as_batched(a, trailing_ndim):
        a = jnp.asarray(a)
        if a.ndim == trailing_ndim:
            return a[None], 1
        assert a.ndim == trailing_ndim + 1 and a.shape[0] in (1, E)
        return a, int(a.shape[0])

    wqkv, n_wqkv = _as_batched(in_proj_w, 2)        # (Ew, 3D, D)
    bqkv, n_bqkv = _as_batched(in_proj_b, 1)        # (Eb, 3D)
    wo, n_wo = _as_batched(out_proj_w, 2)           # (Eo, D, D)
    bo, n_bo = _as_batched(out_proj_b, 1)           # (Eb2, D)

    # bake 1/sqrt(Dh) into the Q rows of the in-projection (no per-head VPU multiply)
    q_scale = jnp.concatenate([jnp.full((D,), scale, jnp.float32),
                               jnp.ones((2 * D,), jnp.float32)])
    wqkv = wqkv.astype(jnp.float32) * q_scale[None, :, None]
    bqkv = bqkv.astype(jnp.float32) * q_scale[None, :]

    # pre-transpose (x @ W^T form) and permute the 3D output columns head-major:
    # [q_h | k_h | v_h] contiguous per head -> one contiguous slice per head in-kernel.
    perm = np.concatenate([np.concatenate([h * Dh + np.arange(Dh),
                                           D + h * Dh + np.arange(Dh),
                                           2 * D + h * Dh + np.arange(Dh)])
                           for h in range(H)])
    wqkv_t = jnp.swapaxes(wqkv, -1, -2)[..., perm].astype(cdt)      # (Ew, D, 3D)
    wo_t = jnp.swapaxes(wo, -1, -2).astype(cdt)                     # (Eo, D, D)
    bqkv2 = bqkv[:, None, :][..., perm].astype(jnp.float32)         # (Eb, 1, 3D)
    bo2 = bo[:, None, :].astype(jnp.float32)                        # (Eb2, 1, D)

    # --- row tiling: grid axis 1 tiles each expert chunk over sequences -------------
    cap = max(target_rows, L)
    cands = [c for c in range(1, bpe + 1)
             if bpe % c == 0 and c * L <= cap and (c * L) % 8 == 0]
    bt = max(cands) if cands else bpe
    rows = bt * L
    R = bpe // bt
    if rows % 8 != 0 and rows != B * L:
        # TODO(synk): pad the sequence/batch dims for row counts not divisible by 8.
        raise ValueError(f"row tile {rows} violates the (8,128) sublane constraint")

    x2 = x.astype(cdt).reshape(B * L, D)    # lane-dense 2-D slab

    # --- VMEM budget derived from block/scratch sizes, clamped to physical VMEM -----
    def _nbytes(shape, dt):
        return int(np.prod(shape)) * jnp.dtype(dt).itemsize

    need = 0
    need += 2 * _nbytes((rows, D), cdt)                 # x block (double-buffered)
    need += 2 * _nbytes((rows, D), out_dtype)           # out block
    if need_weights:
        need += 2 * _nbytes((rows, L), out_dtype)       # attn block
    need += 2 * (_nbytes((D, threeD), cdt) + _nbytes((D, D), cdt)
                 + _nbytes((1, threeD), jnp.float32) + _nbytes((1, D), jnp.float32))
    need += _nbytes((rows, threeD), cdt) + _nbytes((rows, D), cdt)          # scratch
    need += _nbytes((rows, threeD), jnp.float32) + 3 * _nbytes((bt, L, L), jnp.float32)
    need += 4 * 1024 * 1024                             # headroom
    try:
        phys = getattr(pltpu.get_tpu_info(), "vmem_capacity_bytes", 64 * 1024 * 1024)
    except Exception:
        phys = 64 * 1024 * 1024
    vmem_limit = int(min(max(need, 32 * 1024 * 1024), int(phys * 0.75)))

    # --- specs ----------------------------------------------------------------------
    def _widx(n):
        # shared (deepcopy) weights: constant block index -> stays resident, no re-DMA
        return (lambda e, r: (0, 0, 0)) if n == 1 else (lambda e, r: (e, 0, 0))

    row_idx = lambda e, r: (e * R + r, 0)

    in_specs = [
        pl.BlockSpec((rows, D), row_idx),                 # expert/row tile of x
        pl.BlockSpec((1, D, threeD), _widx(n_wqkv)),      # in_proj W^T (head-major cols)
        pl.BlockSpec((1, 1, threeD), _widx(n_bqkv)),      # in_proj bias
        pl.BlockSpec((1, D, D), _widx(n_wo)),             # out_proj W^T
        pl.BlockSpec((1, 1, D), _widx(n_bo)),             # out_proj bias
    ]
    out_spec_o = pl.BlockSpec((rows, D), row_idx)
    out_spec_a = pl.BlockSpec((rows, L), row_idx)

    if need_weights:
        out_shape = (jax.ShapeDtypeStruct((B * L, D), out_dtype),
                     jax.ShapeDtypeStruct((B * L, L), out_dtype))
        out_specs = (out_spec_o, out_spec_a)
    else:
        out_shape = jax.ShapeDtypeStruct((B * L, D), out_dtype)
        out_specs = out_spec_o

    kernel = functools.partial(_mha_tile_kernel, num_heads=H, seq_len=L,
                               embed_dim=D, need_weights=need_weights)

    flops = int(B * L * (2 * D * threeD + 2 * D * D) + 4 * B * H * L * L * Dh)
    transcendentals = int(B * H * L * L)
    bytes_accessed = int(
        x2.size * jnp.dtype(cdt).itemsize
        + (wqkv_t.size + wo_t.size) * jnp.dtype(cdt).itemsize
        + bqkv2.size * 4 + bo2.size * 4
        + B * L * D * jnp.dtype(out_dtype).itemsize
        + (B * L * L * jnp.dtype(out_dtype).itemsize if need_weights else 0))

    grid_spec = pltpu.PrefetchScalarGridSpec(
        num_scalar_prefetch=0,
        grid=(E, R),                       # experts x row tiles (both independent)
        in_specs=in_specs,
        out_specs=out_specs,
        scratch_shapes=[pltpu.VMEM((rows, threeD), cdt),    # qkv projection park
                        pltpu.VMEM((rows, D), cdt)],        # head-concat staging
    )

    res = pl.pallas_call(
        kernel,
        grid_spec=grid_spec,
        out_shape=out_shape,
        compiler_params=pltpu.CompilerParams(
            dimension_semantics=("parallel", "parallel"),   # megacore / 2-TC split
            vmem_limit_bytes=vmem_limit,
        ),
        cost_estimate=pl.CostEstimate(flops=flops,
                                      transcendentals=transcendentals,
                                      bytes_accessed=bytes_accessed),
    )(x2, wqkv_t, bqkv2, wo_t, bo2)

    if need_weights:
        out2, attn2 = res
        return out2.reshape(B, L, D), attn2.reshape(B, L, L)
    return res.reshape(B, L, D), None


def _reference(x, wqkv, bqkv, wo, bo, num_heads, num_experts):
    """Pure-JAX reference matching nn.MultiheadAttention self-attention forward."""
    B, L, D = x.shape
    E = num_experts
    bpe = B // E
    H = num_heads
    Dh = D // H
    outs, attns = [], []
    for e in range(E):
        xe = x[e * bpe:(e + 1) * bpe]                               # (bpe, L, D)
        qkv = jnp.einsum("bld,ed->ble", xe, wqkv[e]) + bqkv[e]      # (bpe, L, 3D)
        q, k, v = jnp.split(qkv, 3, axis=-1)

        def heads(t):
            return t.reshape(bpe, L, H, Dh).transpose(0, 2, 1, 3)   # (bpe, H, L, Dh)

        q, k, v = heads(q), heads(k), heads(v)
        s = jnp.einsum("bhld,bhmd->bhlm", q, k) / math.sqrt(Dh)
        p = jax.nn.softmax(s, axis=-1)
        o = jnp.einsum("bhlm,bhmd->bhld", p, v)
        o = o.transpose(0, 2, 1, 3).reshape(bpe, L, D)
        o = jnp.einsum("bld,ed->ble", o, wo[e]) + bo[e]
        outs.append(o)
        attns.append(p.mean(axis=1))                                # average over heads
    return jnp.concatenate(outs, 0), jnp.concatenate(attns, 0)


if __name__ == "__main__":
    num_experts = 3
    batch_per_expert = 2
    seq_len = 8
    embed_dim = 32
    num_heads = 4
    B_total = num_experts * batch_per_expert

    key = jax.random.PRNGKey(0)
    kx, kw, kb, kwo, kbo = jax.random.split(key, 5)

    x = jax.random.normal(kx, (B_total, seq_len, embed_dim), dtype=jnp.float32)

    # One parameter set (the original MHA), deep-copied to every expert.
    in_proj_w = jax.random.normal(kw, (3 * embed_dim, embed_dim), jnp.float32) * 0.05
    in_proj_b = jax.random.normal(kb, (3 * embed_dim,), jnp.float32) * 0.05
    out_proj_w = jax.random.normal(kwo, (embed_dim, embed_dim), jnp.float32) * 0.05
    out_proj_b = jax.random.normal(kbo, (embed_dim,), jnp.float32) * 0.05

    wqkv_e = jnp.tile(in_proj_w[None], (num_experts, 1, 1))
    bqkv_e = jnp.tile(in_proj_b[None], (num_experts, 1))
    wo_e = jnp.tile(out_proj_w[None], (num_experts, 1, 1))
    bo_e = jnp.tile(out_proj_b[None], (num_experts, 1))

    ref_out, ref_attn = _reference(x, wqkv_e, bqkv_e, wo_e, bo_e, num_heads, num_experts)

    # f32 path, shared (deepcopy) weights resident across all grid steps.
    out, attn = parallel_multihead_attention(
        x, in_proj_w, in_proj_b, out_proj_w, out_proj_b,
        num_heads=num_heads, num_experts=num_experts)
    jax.block_until_ready((out, attn))
    assert jnp.allclose(out, ref_out, atol=1e-4, rtol=1e-4), "output mismatch (f32)"
    assert jnp.allclose(attn, ref_attn, atol=1e-4, rtol=1e-4), "attn mismatch (f32)"

    # distinct per-expert weights (exercises the per-expert index_map path).
    out_e, attn_e = parallel_multihead_attention(
        x, wqkv_e, bqkv_e, wo_e, bo_e, num_heads=num_heads, num_experts=num_experts)
    jax.block_until_ready((out_e, attn_e))
    assert jnp.allclose(out_e, ref_out, atol=1e-4, rtol=1e-4), "output mismatch (E-weights)"
    assert jnp.allclose(attn_e, ref_attn, atol=1e-4, rtol=1e-4), "attn mismatch (E-weights)"

    # bf16 MXU-input fast path (beneficial on v5e/v6e/v7x); f32 accumulation/softmax.
    out16, attn16 = parallel_multihead_attention(
        x, in_proj_w, in_proj_b, out_proj_w, out_proj_b,
        num_heads=num_heads, num_experts=num_experts, compute_dtype=jnp.bfloat16)
    jax.block_until_ready((out16, attn16))
    assert jnp.allclose(out16, ref_out, atol=5e-2, rtol=5e-2), "output mismatch (bf16)"
    assert jnp.allclose(attn16, ref_attn, atol=5e-2, rtol=5e-2), "attn mismatch (bf16)"

    # need_weights=False path: skips the attention-weight accumulator and output stream.
    out_nw, attn_nw = parallel_multihead_attention(
        x, in_proj_w, in_proj_b, out_proj_w, out_proj_b,
        num_heads=num_heads, num_experts=num_experts, need_weights=False)
    jax.block_until_ready(out_nw)
    assert attn_nw is None
    assert jnp.allclose(out_nw, ref_out, atol=1e-4, rtol=1e-4), "output mismatch (no-weights)"

    print("KERNEL_OK")
</pallas_src>

<mosaic_0001>
module attributes {stable_mosaic.version = 11 : i64} {
  func.func @_mha_tile_kernel(%arg0: i32, %arg1: i32, %arg2: memref<16x32xf32, #tpu.memory_space<vmem>>, %arg3: memref<1x32x96xf32, #tpu.memory_space<vmem>>, %arg4: memref<1x1x96xf32, #tpu.memory_space<vmem>>, %arg5: memref<1x32x32xf32, #tpu.memory_space<vmem>>, %arg6: memref<1x1x32xf32, #tpu.memory_space<vmem>>, %arg7: memref<16x32xf32, #tpu.memory_space<vmem>>, %arg8: memref<16x8xf32, #tpu.memory_space<vmem>>, %arg9: memref<16x96xf32, #tpu.memory_space<vmem>>, %arg10: memref<16x32xf32, #tpu.memory_space<vmem>>) attributes {dimension_semantics = [#tpu.dimension_semantics<parallel>, #tpu.dimension_semantics<parallel>], iteration_bounds = array<i64: 3, 1>, scalar_prefetch = 0 : i64, scratch_operands = 2 : i64, tpu.core_type = #tpu.core_type<tc>, window_params = [{transform_indices = @transform_0, window_bounds = array<i64: 16, 32>}, {pipeline_mode = #tpu.pipeline_mode<synchronous>, transform_indices = @transform_1, window_bounds = array<i64: 1, 32, 96>}, {pipeline_mode = #tpu.pipeline_mode<synchronous>, transform_indices = @transform_2, window_bounds = array<i64: 1, 1, 96>}, {pipeline_mode = #tpu.pipeline_mode<synchronous>, transform_indices = @transform_3, window_bounds = array<i64: 1, 32, 32>}, {pipeline_mode = #tpu.pipeline_mode<synchronous>, transform_indices = @transform_4, window_bounds = array<i64: 1, 1, 32>}, {transform_indices = @transform_5, window_bounds = array<i64: 16, 32>}, {transform_indices = @transform_6, window_bounds = array<i64: 16, 8>}]} {
    %c0 = arith.constant 0 : index
    %c0_0 = arith.constant 0 : index
    %0 = vector.load %arg2[%c0, %c0_0] : memref<16x32xf32, #tpu.memory_space<vmem>>, vector<16x32xf32>
    %c0_1 = arith.constant 0 : index
    %c0_2 = arith.constant 0 : index
    %c0_3 = arith.constant 0 : index
    %1 = vector.load %arg3[%c0_1, %c0_2, %c0_3] : memref<1x32x96xf32, #tpu.memory_space<vmem>>, vector<1x32x96xf32>
    %2 = vector.shape_cast %1 : vector<1x32x96xf32> to vector<32x96xf32>
    %cst = arith.constant dense<0.000000e+00> : vector<16x96xf32>
    %3 = tpu.matmul %0, %2, %cst {dimension_numbers = #tpu.dot_dimension_numbers<[1], [0], [0], [1], [0, 0, 1, 1], [], []>} : vector<16x32xf32>, vector<32x96xf32>, vector<16x96xf32> -> vector<16x96xf32>
    %c0_4 = arith.constant 0 : index
    %c0_5 = arith.constant 0 : index
    %c0_6 = arith.constant 0 : index
    %4 = vector.load %arg4[%c0_4, %c0_5, %c0_6] : memref<1x1x96xf32, #tpu.memory_space<vmem>>, vector<1x1x96xf32>
    %5 = vector.shape_cast %4 : vector<1x1x96xf32> to vector<1x96xf32>
    %6 = vector.broadcast %5 : vector<1x96xf32> to vector<16x96xf32>
    %7 = arith.addf %3, %6 : vector<16x96xf32>
    %c0_7 = arith.constant 0 : index
    %c0_8 = arith.constant 0 : index
    %8 = vector.load %arg9[%c0_7, %c0_8] : memref<16x96xf32, #tpu.memory_space<vmem>>, vector<16x96xf32>
    tpu.vector_store %arg9[%c0_7, %c0_8], %7 {strides = array<i32>} : memref<16x96xf32, #tpu.memory_space<vmem>>, vector<16x96xf32>,
    %cst_9 = arith.constant 0.000000e+00 : f32
    %9 = vector.broadcast %cst_9 : f32 to vector<16x8xf32>
    %c0_10 = arith.constant 0 : index
    %c0_11 = arith.constant 0 : index
    %10 = vector.load %arg9[%c0_10, %c0_11] : memref<16x96xf32, #tpu.memory_space<vmem>>, vector<16x24xf32>
    %11 = vector.extract_strided_slice %10 {offsets = [0, 0], sizes = [16, 8], strides = [1, 1]} : vector<16x24xf32> to vector<16x8xf32>
    %12 = vector.shape_cast %11 : vector<16x8xf32> to vector<2x8x8xf32>
    %13 = vector.extract_strided_slice %10 {offsets = [0, 8], sizes = [16, 8], strides = [1, 1]} : vector<16x24xf32> to vector<16x8xf32>
    %14 = vector.shape_cast %13 : vector<16x8xf32> to vector<2x8x8xf32>
    %15 = vector.extract_strided_slice %10 {offsets = [0, 16], sizes = [16, 8], strides = [1, 1]} : vector<16x24xf32> to vector<16x8xf32>
    %16 = vector.shape_cast %15 : vector<16x8xf32> to vector<2x8x8xf32>
    "tpu.trace_start"() <{level = 10 : i32, message = "bld,bmd->blm"}> : () -> ()
    %cst_12 = arith.constant dense<0.000000e+00> : vector<2x8x8xf32>
    %17 = tpu.matmul %12, %14, %cst_12 {dimension_numbers = #tpu.dot_dimension_numbers<[2], [2], [1], [1], [0, 0, 0, 1, 1, 1], [0], [0]>} : vector<2x8x8xf32>, vector<2x8x8xf32>, vector<2x8x8xf32> -> vector<2x8x8xf32>
    "tpu.trace_stop"() : () -> ()
    %cst_13 = arith.constant dense<0xFF800000> : vector<2x8xf32>
    %18 = vector.multi_reduction <maximumf>, %17, %cst_13 [2] : vector<2x8x8xf32> to vector<2x8xf32>
    %19 = vector.shape_cast %18 : vector<2x8xf32> to vector<2x8x1xf32>
    %20 = vector.broadcast %19 : vector<2x8x1xf32> to vector<2x8x8xf32>
    %21 = arith.subf %17, %20 : vector<2x8x8xf32>
    %22 = math.exp %21 : vector<2x8x8xf32>
    %cst_14 = arith.constant dense<0.000000e+00> : vector<2x8xf32>
    %23 = vector.multi_reduction <add>, %22, %cst_14 [2] : vector<2x8x8xf32> to vector<2x8xf32>
    %24 = vector.shape_cast %23 : vector<2x8xf32> to vector<2x8x1xf32>
    %25 = tpu.reciprocal %24 : vector<2x8x1xf32> -> vector<2x8x1xf32>
    %26 = vector.broadcast %25 : vector<2x8x1xf32> to vector<2x8x8xf32>
    %27 = arith.mulf %22, %26 : vector<2x8x8xf32>
    %28 = vector.shape_cast %27 : vector<2x8x8xf32> to vector<16x8xf32>
    %29 = arith.addf %9, %28 : vector<16x8xf32>
    "tpu.trace_start"() <{level = 10 : i32, message = "blm,bmd->bld"}> : () -> ()
    %cst_15 = arith.constant dense<0.000000e+00> : vector<2x8x8xf32>
    %30 = tpu.matmul %27, %16, %cst_15 {dimension_numbers = #tpu.dot_dimension_numbers<[2], [1], [1], [2], [0, 0, 0, 1, 1, 2], [0], [0]>} : vector<2x8x8xf32>, vector<2x8x8xf32>, vector<2x8x8xf32> -> vector<2x8x8xf32>
    "tpu.trace_stop"() : () -> ()
    %31 = vector.shape_cast %30 : vector<2x8x8xf32> to vector<16x8xf32>
    %c0_16 = arith.constant 0 : index
    %c0_17 = arith.constant 0 : index
    %32 = vector.load %arg10[%c0_16, %c0_17] : memref<16x32xf32, #tpu.memory_space<vmem>>, vector<16x8xf32>
    tpu.vector_store %arg10[%c0_16, %c0_17], %31 {strides = array<i32>} : memref<16x32xf32, #tpu.memory_space<vmem>>, vector<16x8xf32>,
    %c0_18 = arith.constant 0 : index
    %c24 = arith.constant 24 : index
    %33 = vector.load %arg9[%c0_18, %c24] : memref<16x96xf32, #tpu.memory_space<vmem>>, vector<16x24xf32>
    %34 = vector.extract_strided_slice %33 {offsets = [0, 0], sizes = [16, 8], strides = [1, 1]} : vector<16x24xf32> to vector<16x8xf32>
    %35 = vector.shape_cast %34 : vector<16x8xf32> to vector<2x8x8xf32>
    %36 = vector.extract_strided_slice %33 {offsets = [0, 8], sizes = [16, 8], strides = [1, 1]} : vector<16x24xf32> to vector<16x8xf32>
    %37 = vector.shape_cast %36 : vector<16x8xf32> to vector<2x8x8xf32>
    %38 = vector.extract_strided_slice %33 {offsets = [0, 16], sizes = [16, 8], strides = [1, 1]} : vector<16x24xf32> to vector<16x8xf32>
    %39 = vector.shape_cast %38 : vector<16x8xf32> to vector<2x8x8xf32>
    "tpu.trace_start"() <{level = 10 : i32, message = "bld,bmd->blm"}> : () -> ()
    %cst_19 = arith.constant dense<0.000000e+00> : vector<2x8x8xf32>
    %40 = tpu.matmul %35, %37, %cst_19 {dimension_numbers = #tpu.dot_dimension_numbers<[2], [2], [1], [1], [0, 0, 0, 1, 1, 1], [0], [0]>} : vector<2x8x8xf32>, vector<2x8x8xf32>, vector<2x8x8xf32> -> vector<2x8x8xf32>
    "tpu.trace_stop"() : () -> ()
    %cst_20 = arith.constant dense<0xFF800000> : vector<2x8xf32>
    %41 = vector.multi_reduction <maximumf>, %40, %cst_20 [2] : vector<2x8x8xf32> to vector<2x8xf32>
    %42 = vector.shape_cast %41 : vector<2x8xf32> to vector<2x8x1xf32>
    %43 = vector.broadcast %42 : vector<2x8x1xf32> to vector<2x8x8xf32>
    %44 = arith.subf %40, %43 : vector<2x8x8xf32>
    %45 = math.exp %44 : vector<2x8x8xf32>
    %cst_21 = arith.constant dense<0.000000e+00> : vector<2x8xf32>
    %46 = vector.multi_reduction <add>, %45, %cst_21 [2] : vector<2x8x8xf32> to vector<2x8xf32>
    %47 = vector.shape_cast %46 : vector<2x8xf32> to vector<2x8x1xf32>
    %48 = tpu.reciprocal %47 : vector<2x8x1xf32> -> vector<2x8x1xf32>
    %49 = vector.broadcast %48 : vector<2x8x1xf32> to vector<2x8x8xf32>
    %50 = arith.mulf %45, %49 : vector<2x8x8xf32>
    %51 = vector.shape_cast %50 : vector<2x8x8xf32> to vector<16x8xf32>
    %52 = arith.addf %29, %51 : vector<16x8xf32>
    "tpu.trace_start"() <{level = 10 : i32, message = "blm,bmd->bld"}> : () -> ()
    %cst_22 = arith.constant dense<0.000000e+00> : vector<2x8x8xf32>
    %53 = tpu.matmul %50, %39, %cst_22 {dimension_numbers = #tpu.dot_dimension_numbers<[2], [1], [1], [2], [0, 0, 0, 1, 1, 2], [0], [0]>} : vector<2x8x8xf32>, vector<2x8x8xf32>, vector<2x8x8xf32> -> vector<2x8x8xf32>
    "tpu.trace_stop"() : () -> ()
    %54 = vector.shape_cast %53 : vector<2x8x8xf32> to vector<16x8xf32>
    %c0_23 = arith.constant 0 : index
    %c8 = arith.constant 8 : index
    %55 = vector.load %arg10[%c0_23, %c8] : memref<16x32xf32, #tpu.memory_space<vmem>>, vector<16x8xf32>
    tpu.vector_store %arg10[%c0_23, %c8], %54 {strides = array<i32>} : memref<16x32xf32, #tpu.memory_space<vmem>>, vector<16x8xf32>,
    %c0_24 = arith.constant 0 : index
    %c48 = arith.constant 48 : index
    %56 = vector.load %arg9[%c0_24, %c48] : memref<16x96xf32, #tpu.memory_space<vmem>>, vector<16x24xf32>
    %57 = vector.extract_strided_slice %56 {offsets = [0, 0], sizes = [16, 8], strides = [1, 1]} : vector<16x24xf32> to vector<16x8xf32>
    %58 = vector.shape_cast %57 : vector<16x8xf32> to vector<2x8x8xf32>
    %59 = vector.extract_strided_slice %56 {offsets = [0, 8], sizes = [16, 8], strides = [1, 1]} : vector<16x24xf32> to vector<16x8xf32>
    %60 = vector.shape_cast %59 : vector<16x8xf32> to vector<2x8x8xf32>
    %61 = vector.extract_strided_slice %56 {offsets = [0, 16], sizes = [16, 8], strides = [1, 1]} : vector<16x24xf32> to vector<16x8xf32>
    %62 = vector.shape_cast %61 : vector<16x8xf32> to vector<2x8x8xf32>
    "tpu.trace_start"() <{level = 10 : i32, message = "bld,bmd->blm"}> : () -> ()
    %cst_25 = arith.constant dense<0.000000e+00> : vector<2x8x8xf32>
    %63 = tpu.matmul %58, %60, %cst_25 {dimension_numbers = #tpu.dot_dimension_numbers<[2], [2], [1], [1], [0, 0, 0, 1, 1, 1], [0], [0]>} : vector<2x8x8xf32>, vector<2x8x8xf32>, vector<2x8x8xf32> -> vector<2x8x8xf32>
    "tpu.trace_stop"() : () -> ()
    %cst_26 = arith.constant dense<0xFF800000> : vector<2x8xf32>
    %64 = vector.multi_reduction <maximumf>, %63, %cst_26 [2] : vector<2x8x8xf32> to vector<2x8xf32>
    %65 = vector.shape_cast %64 : vector<2x8xf32> to vector<2x8x1xf32>
    %66 = vector.broadcast %65 : vector<2x8x1xf32> to vector<2x8x8xf32>
    %67 = arith.subf %63, %66 : vector<2x8x8xf32>
    %68 = math.exp %67 : vector<2x8x8xf32>
    %cst_27 = arith.constant dense<0.000000e+00> : vector<2x8xf32>
    %69 = vector.multi_reduction <add>, %68, %cst_27 [2] : vector<2x8x8xf32> to vector<2x8xf32>
    %70 = vector.shape_cast %69 : vector<2x8xf32> to vector<2x8x1xf32>
    %71 = tpu.reciprocal %70 : vector<2x8x1xf32> -> vector<2x8x1xf32>
    %72 = vector.broadcast %71 : vector<2x8x1xf32> to vector<2x8x8xf32>
    %73 = arith.mulf %68, %72 : vector<2x8x8xf32>
    %74 = vector.shape_cast %73 : vector<2x8x8xf32> to vector<16x8xf32>
    %75 = arith.addf %52, %74 : vector<16x8xf32>
    "tpu.trace_start"() <{level = 10 : i32, message = "blm,bmd->bld"}> : () -> ()
    %cst_28 = arith.constant dense<0.000000e+00> : vector<2x8x8xf32>
    %76 = tpu.matmul %73, %62, %cst_28 {dimension_numbers = #tpu.dot_dimension_numbers<[2], [1], [1], [2], [0, 0, 0, 1, 1, 2], [0], [0]>} : vector<2x8x8xf32>, vector<2x8x8xf32>, vector<2x8x8xf32> -> vector<2x8x8xf32>
    "tpu.trace_stop"() : () -> ()
    %77 = vector.shape_cast %76 : vector<2x8x8xf32> to vector<16x8xf32>
    %c0_29 = arith.constant 0 : index
    %c16 = arith.constant 16 : index
    %78 = vector.load %arg10[%c0_29, %c16] : memref<16x32xf32, #tpu.memory_space<vmem>>, vector<16x8xf32>
    tpu.vector_store %arg10[%c0_29, %c16], %77 {strides = array<i32>} : memref<16x32xf32, #tpu.memory_space<vmem>>, vector<16x8xf32>,
    %c0_30 = arith.constant 0 : index
    %c72 = arith.constant 72 : index
    %79 = vector.load %arg9[%c0_30, %c72] : memref<16x96xf32, #tpu.memory_space<vmem>>, vector<16x24xf32>
    %80 = vector.extract_strided_slice %79 {offsets = [0, 0], sizes = [16, 8], strides = [1, 1]} : vector<16x24xf32> to vector<16x8xf32>
    %81 = vector.shape_cast %80 : vector<16x8xf32> to vector<2x8x8xf32>
    %82 = vector.extract_strided_slice %79 {offsets = [0, 8], sizes = [16, 8], strides = [1, 1]} : vector<16x24xf32> to vector<16x8xf32>
    %83 = vector.shape_cast %82 : vector<16x8xf32> to vector<2x8x8xf32>
    %84 = vector.extract_strided_slice %79 {offsets = [0, 16], sizes = [16, 8], strides = [1, 1]} : vector<16x24xf32> to vector<16x8xf32>
    %85 = vector.shape_cast %84 : vector<16x8xf32> to vector<2x8x8xf32>
    "tpu.trace_start"() <{level = 10 : i32, message = "bld,bmd->blm"}> : () -> ()
    %cst_31 = arith.constant dense<0.000000e+00> : vector<2x8x8xf32>
    %86 = tpu.matmul %81, %83, %cst_31 {dimension_numbers = #tpu.dot_dimension_numbers<[2], [2], [1], [1], [0, 0, 0, 1, 1, 1], [0], [0]>} : vector<2x8x8xf32>, vector<2x8x8xf32>, vector<2x8x8xf32> -> vector<2x8x8xf32>
    "tpu.trace_stop"() : () -> ()
    %cst_32 = arith.constant dense<0xFF800000> : vector<2x8xf32>
    %87 = vector.multi_reduction <maximumf>, %86, %cst_32 [2] : vector<2x8x8xf32> to vector<2x8xf32>
    %88 = vector.shape_cast %87 : vector<2x8xf32> to vector<2x8x1xf32>
    %89 = vector.broadcast %88 : vector<2x8x1xf32> to vector<2x8x8xf32>
    %90 = arith.subf %86, %89 : vector<2x8x8xf32>
    %91 = math.exp %90 : vector<2x8x8xf32>
    %cst_33 = arith.constant dense<0.000000e+00> : vector<2x8xf32>
    %92 = vector.multi_reduction <add>, %91, %cst_33 [2] : vector<2x8x8xf32> to vector<2x8xf32>
    %93 = vector.shape_cast %92 : vector<2x8xf32> to vector<2x8x1xf32>
    %94 = tpu.reciprocal %93 : vector<2x8x1xf32> -> vector<2x8x1xf32>
    %95 = vector.broadcast %94 : vector<2x8x1xf32> to vector<2x8x8xf32>
    %96 = arith.mulf %91, %95 : vector<2x8x8xf32>
    %97 = vector.shape_cast %96 : vector<2x8x8xf32> to vector<16x8xf32>
    %98 = arith.addf %75, %97 : vector<16x8xf32>
    "tpu.trace_start"() <{level = 10 : i32, message = "blm,bmd->bld"}> : () -> ()
    %cst_34 = arith.constant dense<0.000000e+00> : vector<2x8x8xf32>
    %99 = tpu.matmul %96, %85, %cst_34 {dimension_numbers = #tpu.dot_dimension_numbers<[2], [1], [1], [2], [0, 0, 0, 1, 1, 2], [0], [0]>} : vector<2x8x8xf32>, vector<2x8x8xf32>, vector<2x8x8xf32> -> vector<2x8x8xf32>
    "tpu.trace_stop"() : () -> ()
    %100 = vector.shape_cast %99 : vector<2x8x8xf32> to vector<16x8xf32>
    %c0_35 = arith.constant 0 : index
    %c24_36 = arith.constant 24 : index
    %101 = vector.load %arg10[%c0_35, %c24_36] : memref<16x32xf32, #tpu.memory_space<vmem>>, vector<16x8xf32>
    tpu.vector_store %arg10[%c0_35, %c24_36], %100 {strides = array<i32>} : memref<16x32xf32, #tpu.memory_space<vmem>>, vector<16x8xf32>,
    %c0_37 = arith.constant 0 : index
    %c0_38 = arith.constant 0 : index
    %102 = vector.load %arg10[%c0_37, %c0_38] : memref<16x32xf32, #tpu.memory_space<vmem>>, vector<16x32xf32>
    %c0_39 = arith.constant 0 : index
    %c0_40 = arith.constant 0 : index
    %c0_41 = arith.constant 0 : index
    %103 = vector.load %arg5[%c0_39, %c0_40, %c0_41] : memref<1x32x32xf32, #tpu.memory_space<vmem>>, vector<1x32x32xf32>
    %104 = vector.shape_cast %103 : vector<1x32x32xf32> to vector<32x32xf32>
    %cst_42 = arith.constant dense<0.000000e+00> : vector<16x32xf32>
    %105 = tpu.matmul %102, %104, %cst_42 {dimension_numbers = #tpu.dot_dimension_numbers<[1], [0], [0], [1], [0, 0, 1, 1], [], []>} : vector<16x32xf32>, vector<32x32xf32>, vector<16x32xf32> -> vector<16x32xf32>
    %c0_43 = arith.constant 0 : index
    %c0_44 = arith.constant 0 : index
    %c0_45 = arith.constant 0 : index
    %106 = vector.load %arg6[%c0_43, %c0_44, %c0_45] : memref<1x1x32xf32, #tpu.memory_space<vmem>>, vector<1x1x32xf32>
    %107 = vector.shape_cast %106 : vector<1x1x32xf32> to vector<1x32xf32>
    %108 = vector.broadcast %107 : vector<1x32xf32> to vector<16x32xf32>
    %109 = arith.addf %105, %108 : vector<16x32xf32>
    %c0_46 = arith.constant 0 : index
    %c0_47 = arith.constant 0 : index
    %110 = vector.load %arg7[%c0_46, %c0_47] : memref<16x32xf32, #tpu.memory_space<vmem>>, vector<16x32xf32>
    tpu.vector_store %arg7[%c0_46, %c0_47], %109 {strides = array<i32>} : memref<16x32xf32, #tpu.memory_space<vmem>>, vector<16x32xf32>,
    %cst_48 = arith.constant 2.500000e-01 : f32
    %111 = vector.broadcast %cst_48 : f32 to vector<16x8xf32>
    %112 = arith.mulf %98, %111 : vector<16x8xf32>
    %c0_49 = arith.constant 0 : index
    %c0_50 = arith.constant 0 : index
    %113 = vector.load %arg8[%c0_49, %c0_50] : memref<16x8xf32, #tpu.memory_space<vmem>>, vector<16x8xf32>
    tpu.vector_store %arg8[%c0_49, %c0_50], %112 {strides = array<i32>} : memref<16x8xf32, #tpu.memory_space<vmem>>, vector<16x8xf32>,
    return
  }
  func.func @transform_0(%arg0: i32, %arg1: i32) -> (i32, i32) {
    %c1_i32 = arith.constant 1 : i32
    %0 = arith.muli %arg0, %c1_i32 : i32
    %1 = arith.addi %0, %arg1 : i32
    %c0_i32 = arith.constant 0 : i32
    %c0_i32_0 = arith.constant 0 : i32
    return %1, %c0_i32 : i32, i32
  }
  func.func @transform_1(%arg0: i32, %arg1: i32) -> (i32, i32, i32) {
    %c0_i32 = arith.constant 0 : i32
    %c0_i32_0 = arith.constant 0 : i32
    %c0_i32_1 = arith.constant 0 : i32
    %c0_i32_2 = arith.constant 0 : i32
    return %c0_i32, %c0_i32_0, %c0_i32_1 : i32, i32, i32
  }
  func.func @transform_2(%arg0: i32, %arg1: i32) -> (i32, i32, i32) {
    %c0_i32 = arith.constant 0 : i32
    %c0_i32_0 = arith.constant 0 : i32
    %c0_i32_1 = arith.constant 0 : i32
    %c0_i32_2 = arith.constant 0 : i32
    return %c0_i32, %c0_i32_0, %c0_i32_1 : i32, i32, i32
  }
  func.func @transform_3(%arg0: i32, %arg1: i32) -> (i32, i32, i32) {
    %c0_i32 = arith.constant 0 : i32
    %c0_i32_0 = arith.constant 0 : i32
    %c0_i32_1 = arith.constant 0 : i32
    %c0_i32_2 = arith.constant 0 : i32
    return %c0_i32, %c0_i32_0, %c0_i32_1 : i32, i32, i32
  }
  func.func @transform_4(%arg0: i32, %arg1: i32) -> (i32, i32, i32) {
    %c0_i32 = arith.constant 0 : i32
    %c0_i32_0 = arith.constant 0 : i32
    %c0_i32_1 = arith.constant 0 : i32
    %c0_i32_2 = arith.constant 0 : i32
    return %c0_i32, %c0_i32_0, %c0_i32_1 : i32, i32, i32
  }
  func.func @transform_5(%arg0: i32, %arg1: i32) -> (i32, i32) {
    %c1_i32 = arith.constant 1 : i32
    %0 = arith.muli %arg0, %c1_i32 : i32
    %1 = arith.addi %0, %arg1 : i32
    %c0_i32 = arith.constant 0 : i32
    %c0_i32_0 = arith.constant 0 : i32
    return %1, %c0_i32 : i32, i32
  }
  func.func @transform_6(%arg0: i32, %arg1: i32) -> (i32, i32) {
    %c1_i32 = arith.constant 1 : i32
    %0 = arith.muli %arg0, %c1_i32 : i32
    %1 = arith.addi %0, %arg1 : i32
    %c0_i32 = arith.constant 0 : i32
    %c0_i32_0 = arith.constant 0 : i32
    return %1, %c0_i32 : i32, i32
  }
}

</mosaic_0001>

<llo_original>
// kernel: tpu_custom_call.1
$region0: #{tpu_custom_call.1}
  #allocation0 [shape = 'u32[]', space=smem, size = 0x4, offset = 0x4, fixed_abs, tag = 'smem constant byte address 0x4 - core index']
  #allocation1 [shape = 'u32[144,128]{1,0:T(1,128)}', space=vmem, size = 0x12000, scoped, tag = 'internal scratch']
  #allocation2 [shape = 'f32[16,96]{1,0:T(8,128)}', space=vmem, size = 0x2000, scoped, tag = 'scratch operand']
  #allocation3 [shape = 'f32[16,32]{1,0:T(8,128)}', space=vmem, size = 0x2000, scoped, tag = 'scratch operand']
  %s0 = inlined_call_operand.vmem [shape: f32[48,32], index: 0, kind: input, shape index: {}]
  %s1 = inlined_call_operand.vmem [shape: f32[1,32,96], index: 1, kind: input, shape index: {}]
  %s2 = inlined_call_operand.vmem [shape: f32[1,1,96], index: 2, kind: input, shape index: {}]
  %s3 = inlined_call_operand.vmem [shape: f32[1,32,32], index: 3, kind: input, shape index: {}]
  %s4 = inlined_call_operand.vmem [shape: f32[1,1,32], index: 4, kind: input, shape index: {}]
  %s5 = inlined_call_operand.vmem [shape: f32[48,32], index: 5, kind: output, shape index: {0}]
  %s6 = inlined_call_operand.vmem [shape: f32[48,8], index: 6, kind: output, shape index: {1}]
  %7 = xla_tuple %s5, %s6
  %s8 = sld [smem:[#allocation0]]
  $region61: #{tpu_custom_call.1} parent=0
    _
  %s10 = ssub.s32 1, %s8
  %s11 = scalar_select 0, %s10, %s8
  loop: start=0, step=1, limit=5
  $region2: #{tpu_custom_call.1} parent=0 // loop_pre_header
    _
  $region3: #{tpu_custom_call.1} parent=0 // loop_header
    %s13 = sphi 0, %s17
    %p14 = scmp.ge.s32.totalorder %s13, 5
    %s20 = sphi 0, %s32
    %s21 = sphi 0, %s28
    %s22 = sphi 0, %s20
    %s23 = sphi 0, %s21
    %s24 = sphi 0, %s22
    %s25 = sphi 0, %s23
    %s37 = sphi 0, %s39
    %s40 = sphi 0, %s37
    %s41 = sphi 0, %s40
    %s57 = sphi 0, %s41
    %s61 = sphi 0, %s61
    %s63 = sphi 0, %s61
    %s64 = sphi 0, %s63
    %s78 = sphi 0, %s64
    %s82 = sphi 0, %s82
    %s84 = sphi 0, %s82
    %s85 = sphi 0, %s84
    %s99 = sphi 0, %s85
    %s103 = sphi 0, %s103
    %s105 = sphi 0, %s103
    %s106 = sphi 0, %s105
    %s120 = sphi 0, %s106
    %s124 = sphi 0, %s124
    %s126 = sphi 0, %s124
    %s127 = sphi 0, %s126
    %s141 = sphi 0, %s127
    %s149 = sphi 0, %s151
    %s152 = sphi 0, %s149
    %s153 = sphi 0, %s152
    %s169 = sphi 0, %s153
    %s177 = sphi 0, %s179
    %s180 = sphi 0, %s177
    %s181 = sphi 0, %s180
    %s197 = sphi 0, %s181
  $region4: #{tpu_custom_call.1} parent=0 // loop_header_branch
    %16 = sbr.rel (%p14) target = $region8
  $region5: #{tpu_custom_call.1} parent=0 // loop_body
    %s18 = ssub.s32 %s13, 1
    %s19 = ssub.s32 %s13, 2
    %s26 = sadd.s32 1, %s21
    %p27 = scmp.ge.s32.totalorder %s26, 1
    %s28 = scalar_select %p27, 0, %s26
    %s29 = sadd.s32 1, %s20
    %s30 = scalar_select %p27, %s29, %s20
    %p31 = scmp.ge.s32.totalorder %s30, 3
    %s32 = scalar_select %p31, 0, %s30
    %s33 = sadd.s32 %s20, %s21
    %s34 = sadd.s32 %s32, %s28
    %s35 = ssub.s32 %s33, %s34
    %p36 = scmp.eq.s32.totalorder %s35, 0
    %s38 = sadd.s32 %s37, 1
    %s39 = scalar_select %p36, %s37, %s38
    %p42 = pneg %p36
    %p43 = scmp.eq.s32.totalorder %s13, 2
    %p44 = por %p42, %p43
    %p45 = scmp.ne.s32.totalorder %s37, %s40
    %p46 = scmp.eq.s32.totalorder %s13, 0
    %p47 = por %p45, %p46
    %p48 = scmp.ne.s32.totalorder %s37, %s40
    %p49 = scmp.eq.s32.totalorder %s18, 2
    %p50 = por %p48, %p49
    %p51 = scmp.ne.s32.totalorder %s40, %s41
    %p52 = scmp.eq.s32.totalorder %s18, 0
    %p53 = por %p51, %p52
    %p54 = scmp.ne.s32.totalorder %s40, %s41
    %p55 = scmp.eq.s32.totalorder %s19, 2
    %p56 = por %p54, %p55
    %p58 = scmp.ne.s32.totalorder %s41, %s57
    %p59 = scmp.eq.s32.totalorder %s19, 0
    %p60 = por %p58, %p59
    %s62 = sadd.s32 %s61, 1
    %p65 = scmp.eq.s32.totalorder %s13, 2
    %p66 = scmp.ne.s32.totalorder %s61, %s63
    %p67 = scmp.eq.s32.totalorder %s13, 0
    %p68 = por %p66, %p67
    %p69 = scmp.ne.s32.totalorder %s61, %s63
    %p70 = scmp.eq.s32.totalorder %s18, 2
    %p71 = por %p69, %p70
    %p72 = scmp.ne.s32.totalorder %s63, %s64
    %p73 = scmp.eq.s32.totalorder %s18, 0
    %p74 = por %p72, %p73
    %p75 = scmp.ne.s32.totalorder %s63, %s64
    %p76 = scmp.eq.s32.totalorder %s19, 2
    %p77 = por %p75, %p76
    %p79 = scmp.ne.s32.totalorder %s64, %s78
    %p80 = scmp.eq.s32.totalorder %s19, 0
    %p81 = por %p79, %p80
    %s83 = sadd.s32 %s82, 1
    %p86 = scmp.eq.s32.totalorder %s13, 2
    %p87 = scmp.ne.s32.totalorder %s82, %s84
    %p88 = scmp.eq.s32.totalorder %s13, 0
    %p89 = por %p87, %p88
    %p90 = scmp.ne.s32.totalorder %s82, %s84
    %p91 = scmp.eq.s32.totalorder %s18, 2
    %p92 = por %p90, %p91
    %p93 = scmp.ne.s32.totalorder %s84, %s85
    %p94 = scmp.eq.s32.totalorder %s18, 0
    %p95 = por %p93, %p94
    %p96 = scmp.ne.s32.totalorder %s84, %s85
    %p97 = scmp.eq.s32.totalorder %s19, 2
    %p98 = por %p96, %p97
    %p100 = scmp.ne.s32.totalorder %s85, %s99
    %p101 = scmp.eq.s32.totalorder %s19, 0
    %p102 = por %p100, %p101
    %s104 = sadd.s32 %s103, 1
    %p107 = scmp.eq.s32.totalorder %s13, 2
    %p108 = scmp.ne.s32.totalorder %s103, %s105
    %p109 = scmp.eq.s32.totalorder %s13, 0
    %p110 = por %p108, %p109
    %p111 = scmp.ne.s32.totalorder %s103, %s105
    %p112 = scmp.eq.s32.totalorder %s18, 2
    %p113 = por %p111, %p112
    %p114 = scmp.ne.s32.totalorder %s105, %s106
    %p115 = scmp.eq.s32.totalorder %s18, 0
    %p116 = por %p114, %p115
    %p117 = scmp.ne.s32.totalorder %s105, %s106
    %p118 = scmp.eq.s32.totalorder %s19, 2
    %p119 = por %p117, %p118
    %p121 = scmp.ne.s32.totalorder %s106, %s120
    %p122 = scmp.eq.s32.totalorder %s19, 0
    %p123 = por %p121, %p122
    %s125 = sadd.s32 %s124, 1
    %p128 = scmp.eq.s32.totalorder %s13, 2
    %p129 = scmp.ne.s32.totalorder %s124, %s126
    %p130 = scmp.eq.s32.totalorder %s13, 0
    %p131 = por %p129, %p130
    %p132 = scmp.ne.s32.totalorder %s124, %s126
    %p133 = scmp.eq.s32.totalorder %s18, 2
    %p134 = por %p132, %p133
    %p135 = scmp.ne.s32.totalorder %s126, %s127
    %p136 = scmp.eq.s32.totalorder %s18, 0
    %p137 = por %p135, %p136
    %p138 = scmp.ne.s32.totalorder %s126, %s127
    %p139 = scmp.eq.s32.totalorder %s19, 2
    %p140 = por %p138, %p139
    %p142 = scmp.ne.s32.totalorder %s127, %s141
    %p143 = scmp.eq.s32.totalorder %s19, 0
    %p144 = por %p142, %p143
    %s145 = sadd.s32 %s20, %s21
    %s146 = sadd.s32 %s32, %s28
    %s147 = ssub.s32 %s145, %s146
    %p148 = scmp.eq.s32.totalorder %s147, 0
    %s150 = sadd.s32 %s149, 1
    %s151 = scalar_select %p148, %s149, %s150
    %p154 = pneg %p148
    %p155 = scmp.eq.s32.totalorder %s13, 2
    %p156 = por %p154, %p155
    %p157 = scmp.ne.s32.totalorder %s149, %s152
    %p158 = scmp.eq.s32.totalorder %s13, 0
    %p159 = por %p157, %p158
    %p160 = scmp.ne.s32.totalorder %s149, %s152
    %p161 = scmp.eq.s32.totalorder %s18, 2
    %p162 = por %p160, %p161
    %p163 = scmp.ne.s32.totalorder %s152, %s153
    %p164 = scmp.eq.s32.totalorder %s18, 0
    %p165 = por %p163, %p164
    %p166 = scmp.ne.s32.totalorder %s152, %s153
    %p167 = scmp.eq.s32.totalorder %s19, 2
    %p168 = por %p166, %p167
    %p170 = scmp.ne.s32.totalorder %s153, %s169
    %p171 = scmp.eq.s32.totalorder %s19, 0
    %p172 = por %p170, %p171
    %s173 = sadd.s32 %s20, %s21
    %s174 = sadd.s32 %s32, %s28
    %s175 = ssub.s32 %s173, %s174
    %p176 = scmp.eq.s32.totalorder %s175, 0
    %s178 = sadd.s32 %s177, 1
    %s179 = scalar_select %p176, %s177, %s178
    %p182 = pneg %p176
    %p183 = scmp.eq.s32.totalorder %s13, 2
    %p184 = por %p182, %p183
    %p185 = scmp.ne.s32.totalorder %s177, %s180
    %p186 = scmp.eq.s32.totalorder %s13, 0
    %p187 = por %p185, %p186
    %p188 = scmp.ne.s32.totalorder %s177, %s180
    %p189 = scmp.eq.s32.totalorder %s18, 2
    %p190 = por %p188, %p189
    %p191 = scmp.ne.s32.totalorder %s180, %s181
    %p192 = scmp.eq.s32.totalorder %s18, 0
    %p193 = por %p191, %p192
    %p194 = scmp.ne.s32.totalorder %s180, %s181
    %p195 = scmp.eq.s32.totalorder %s19, 2
    %p196 = por %p194, %p195
    %p198 = scmp.ne.s32.totalorder %s181, %s197
    %p199 = scmp.eq.s32.totalorder %s19, 0
    %p200 = por %p198, %p199
    %p201 = scmp.le.s32.totalorder 1, %s13
    %p202 = scmp.lt.s32.totalorder %s13, 4
    %p203 = pnand %p201, %p202
    %p204 = pneg %p203
    // Predicated region
    $region9: #{tpu_custom_call.1} parent=5 // pred_check
      _
    $region10: #{tpu_custom_call.1} parent=5 // pred_check_branch
      %206 = sbr.rel (%p203) target = $region12
    $region11: #{tpu_custom_call.1} parent=5 // pred_region
      %s207 = ssub.s32 %s13, 1
      // Predicated region
      $region13: #{tpu_custom_call.1} parent=11 // pred_check
        %p208 = pneg %p74
      $region14: #{tpu_custom_call.1} parent=11 // pred_check_branch
        %210 = sbr.rel (%p208) target = $region16
      $region15: #{tpu_custom_call.1} parent=11 // pred_region
        _
      $region16: #{tpu_custom_call.1} parent=11 // pred_fallthru
        _
      // Predicated region
      $region17: #{tpu_custom_call.1} parent=11 // pred_check
        %p211 = pneg %p95
      $region18: #{tpu_custom_call.1} parent=11 // pred_check_branch
        %213 = sbr.rel (%p211) target = $region20
      $region19: #{tpu_custom_call.1} parent=11 // pred_region
        _
      $region20: #{tpu_custom_call.1} parent=11 // pred_fallthru
        _
      // Predicated region
      $region21: #{tpu_custom_call.1} parent=11 // pred_check
        %p214 = pneg %p116
      $region22: #{tpu_custom_call.1} parent=11 // pred_check_branch
        %216 = sbr.rel (%p214) target = $region24
      $region23: #{tpu_custom_call.1} parent=11 // pred_region
        _
      $region24: #{tpu_custom_call.1} parent=11 // pred_fallthru
        _
      // Predicated region
      $region25: #{tpu_custom_call.1} parent=11 // pred_check
        %p217 = pneg %p137
      $region26: #{tpu_custom_call.1} parent=11 // pred_check_branch
        %219 = sbr.rel (%p217) target = $region28
      $region27: #{tpu_custom_call.1} parent=11 // pred_region
        _
      $region28: #{tpu_custom_call.1} parent=11 // pred_fallthru
        _
    $region12: #{tpu_custom_call.1} parent=5 // pred_fallthru
      _
    %p220 = scmp.lt.s32.totalorder %s13, 3
    // Predicated region
    $region29: #{tpu_custom_call.1} parent=5 // pred_check
      %p221 = pneg %p220
    $region30: #{tpu_custom_call.1} parent=5 // pred_check_branch
      %223 = sbr.rel (%p221) target = $region32
    $region31: #{tpu_custom_call.1} parent=5 // pred_region
      // Predicated region
      $region33: #{tpu_custom_call.1} parent=31 // pred_check
        %p224 = pneg %p47
      $region34: #{tpu_custom_call.1} parent=31 // pred_check_branch
        %226 = sbr.rel (%p224) target = $region36
      $region35: #{tpu_custom_call.1} parent=31 // pred_region
        %s227 = sadd.s32 %s20, %s21
        %s228 = smul.u32 2, %s227
        %p229 = scmp.lt.s32.totalorder %s228, 5
        %s230 = scalar_select %p229, %s228, 5
        %s231 = smul.addr %s230, 8
        %s232 = scalar_lea.vmem %s0, %s231
        %s233 = sadd.s32 %s20, %s21
        %s234 = smul.u32 2, %s233
      $region36: #{tpu_custom_call.1} parent=31 // pred_fallthru
        _
    $region32: #{tpu_custom_call.1} parent=5 // pred_fallthru
      _
    %p235 = scmp.le.s32.totalorder 1, %s13
    %p236 = scmp.lt.s32.totalorder %s13, 4
    %p237 = pnand %p235, %p236
    %p238 = pneg %p237
    // Predicated region
    $region37: #{tpu_custom_call.1} parent=5 // pred_check
      _
    $region38: #{tpu_custom_call.1} parent=5 // pred_check_branch
      %240 = sbr.rel (%p237) target = $region40
    $region39: #{tpu_custom_call.1} parent=5 // pred_region
      %s241 = ssub.s32 %s13, 1
      %s242 = sadd.s32 %s22, %s23
      %s243 = smul.u32 2, %s242
      %p244 = scmp.lt.s32.totalorder %s243, 5
      %s245 = scalar_select %p244, %s243, 5
      %s246 = smul.addr %s245, 8
      %s247 = scalar_lea.vmem %s0, %s246
      %p248 = pneg %p53
      %p249 = pneg %p50
      %p250 = pneg %p74
      %p251 = pneg %p71
      %p252 = pneg %p95
      %p253 = pneg %p92
      %p254 = pneg %p116
      %p255 = pneg %p113
      %p256 = pneg %p137
      %p257 = pneg %p134
      %p258 = pneg %p165
      %p259 = pneg %p162
      %s260 = sadd.s32 %s22, %s23
      %s261 = smul.u32 2, %s260
      %p262 = scmp.lt.s32.totalorder %s261, 5
      %s263 = scalar_select %p262, %s261, 5
      %s264 = smul.addr %s263, 8
      %s265 = scalar_lea.vmem %s5, %s264
      %p266 = pneg %p193
      %p267 = pneg %p190
      %s268 = sadd.s32 %s22, %s23
      %s269 = smul.u32 2, %s268
      %p270 = scmp.lt.s32.totalorder %s269, 5
      %s271 = scalar_select %p270, %s269, 5
      %s272 = smul.addr %s271, 8
      %s273 = scalar_lea.vmem %s6, %s272
      %s274 = sadd.s32 %s22, %s23
      %s275 = smul.u32 2, %s274
      %p276 = scmp.lt.s32.totalorder %s275, 5
      %s277 = scalar_select %p276, %s275, 5
      %s278 = smul.addr %s277, 8
      %s279 = scalar_lea.vmem %s0, %s278
      %s280 = sadd.s32 %s22, %s23
      %s281 = smul.u32 2, %s280
      %s282 = sadd.s32 %s22, %s23
      %s283 = smul.u32 2, %s282
      %p284 = scmp.lt.s32.totalorder %s283, 5
      %s285 = scalar_select %p284, %s283, 5
      %s286 = smul.addr %s285, 8
      %s287 = scalar_lea.vmem %s5, %s286
      %s288 = sadd.s32 %s22, %s23
      %s289 = smul.u32 2, %s288
      %s290 = sadd.s32 %s22, %s23
      %s291 = smul.u32 2, %s290
      %p292 = scmp.lt.s32.totalorder %s291, 5
      %s293 = scalar_select %p292, %s291, 5
      %s294 = smul.addr %s293, 8
      %s295 = scalar_lea.vmem %s6, %s294
      %s296 = sadd.s32 %s22, %s23
      %s297 = smul.u32 2, %s296
      %v298 = vld [vmem:[%s279] sm:$0xff]
      %v299 = vld [vmem:[%s279 + $0x8] sm:$0xff]
      %v300 = vld [vmem:[%s1] sm:$0xff]
      %v301 = vld [vmem:[%s1 + $0x8] sm:$0xff]
      %v302 = vld [vmem:[%s1 + $0x10] sm:$0xff]
      %v303 = vld [vmem:[%s1 + $0x18] sm:$0xff]
      %v304 = vld [vmem:[%s2] sm:$0x1]
      %v306 = vlaneseq
      %v307 = vshrl.u32 %v306, 7
      %v308 = vsub.s32 0, %v307
      %v309 = vrot.slane %v304, %v308
      %vm311 = vcmask 261120
      %v313 = vsel %vm311, %v298, 0
      %v316 = vsel %vm311, %v299, 0
      %318 = vmatprep.subr.mxu0 0.0
      %319 = vmatpush1.msra.mxu0 %v300
      %320 = vmatprep.subr.mxu0 0.0
      %321 = vmatpush1.msra.mxu0 %v301
      %322 = vmatprep.subr.mxu0 0.0
      %323 = vmatpush1.msra.mxu0 %v302
      %324 = vmatprep.subr.mxu0 0.0
      %325 = vmatpush1.msra.mxu0 %v303
      %326 = vmatprep.subr.mxu0 0.0
      %327 = vmatpush1.msra.mxu0 0.0
      %328 = vmatprep.subr.mxu0 0.0
      %329 = vmatpush1.msra.mxu0 0.0
      %330 = vmatprep.subr.mxu0 0.0
      %331 = vmatpush1.msra.mxu0 0.0
      %332 = vmatprep.subr.mxu0 0.0
      %333 = vmatpush1.msra.mxu0 0.0
      %334 = vmatprep.subr.mxu0 0.0
      %335 = vmatpush1.msra.mxu0 0.0
      %336 = vmatprep.subr.mxu0 0.0
      %337 = vmatpush1.msra.mxu0 0.0
      %338 = vmatprep.subr.mxu0 0.0
      %339 = vmatpush1.msra.mxu0 0.0
      %340 = vmatprep.subr.mxu0 0.0
      %341 = vmatpush1.msra.mxu0 0.0
      %342 = vmatprep.subr.mxu0 0.0
      %343 = vmatpush1.msra.mxu0 0.0
      %344 = vmatprep.subr.mxu0 0.0
      %345 = vmatpush1.msra.mxu0 0.0
      %346 = vmatprep.subr.mxu0 0.0
      %347 = vmatpush1.msra.mxu0 0.0
      %348 = vmatprep.subr.mxu0 0.0
      %349 = vmatpush1.msra.mxu0 0.0
      %350 = vmatprep.subr.mxu0 0.0
      %351 = vmatpush1.msra.mxu0 0.0
      %352 = vmatprep.subr.mxu0 0.0
      %353 = vmatpush1.msra.mxu0 0.0
      %354 = vmatprep.subr.mxu0 0.0
      %355 = vmatpush1.msra.mxu0 0.0
      %356 = vmatprep.subr.mxu0 0.0
      %357 = vmatpush1.msra.mxu0 0.0
      %358 = vmatprep.subr.mxu0 0.0
      %359 = vmatpush1.msra.mxu0 0.0
      %360 = vmatprep.subr.mxu0 0.0
      %361 = vmatpush1.msra.mxu0 0.0
      %362 = vmatprep.subr.mxu0 0.0
      %363 = vmatpush1.msra.mxu0 0.0
      %364 = vmatprep.subr.mxu0 0.0
      %365 = vmatpush1.msra.mxu0 0.0
      %366 = vmatprep.subr.mxu0 0.0
      %367 = vmatpush1.msra.mxu0 0.0
      %368 = vmatprep.subr.mxu0 0.0
      %369 = vmatpush1.msra.mxu0 0.0
      %370 = vmatprep.subr.mxu0 0.0
      %371 = vmatpush1.msra.mxu0 0.0
      %372 = vmatprep.subr.mxu0 0.0
      %373 = vmatpush1.msra.mxu0 0.0
      %374 = vmatprep.subr.mxu0 0.0
      %375 = vmatpush1.msra.mxu0 0.0
      %376 = vmatprep.subr.mxu0 0.0
      %377 = vmatpush1.msra.mxu0 0.0
      %378 = vmatprep.subr.mxu0 0.0
      %379 = vmatpush1.msra.mxu0 0.0
      %380 = vmatprep.subr.mxu0 0.0
      %381 = vmatpush1.msra.mxu0 0.0
      %382 = vmatprep.mubr.f32.mxu0 0.0
      %383 = vmatmul.mubr.f32.gmra.mrb[0].mxu0 %v313
      %v384 = vpop.f32.mrb[0].mxu0
      %v385 = vadd.f32 %v309, %v384
      %v386 = vpop.f32.mrb[0].mxu0
      %387 = vmatprep.mubr.f32.mxu0 0.0
      %388 = vmatmul.mubr.f32.gmra.mrb[0].mxu0 %v316
      %v389 = vpop.f32.mrb[0].mxu0
      %v390 = vadd.f32 %v309, %v389
      %v391 = vpop.f32.mrb[0].mxu0
      %392 = vdwg.mxu0
      %vm393 = vcmask 785408
      %394 = vst.msk [vmem:[#allocation2] sm:$0xff] %vm393, %v385
      %395 = vst.msk [vmem:[#allocation2 + $0x8] sm:$0xff] %vm393, %v390
      %v396 = vld [vmem:[#allocation2] sm:$0xff]
      %v397 = vld [vmem:[#allocation2 + $0x8] sm:$0xff]
      %399 = vrot.lane.b32.xlu0 %v396, 120
      %v400 = vpop.permute.xlu0 %399
      %vm401 = vcmask 64512
      %v402 = vsel %vm401, %v396, 0
      %v404 = vsel %vm401, %v400, 0
      %406 = vmatprep.subr.mxu0 0.0
      %407 = vmatpush1.xpose.msra.mxu0 %v404
      %408 = vmatprep.subr.mxu0 0.0
      %409 = vmatpush1.xpose.msra.mxu0 0.0
      %410 = vmatprep.subr.mxu0 0.0
      %411 = vmatpush1.xpose.msra.mxu0 0.0
      %412 = vmatprep.subr.mxu0 0.0
      %413 = vmatpush1.xpose.msra.mxu0 0.0
      %414 = vmatprep.subr.mxu0 0.0
      %415 = vmatpush1.xpose.msra.mxu0 0.0
      %416 = vmatprep.subr.mxu0 0.0
      %417 = vmatpush1.xpose.msra.mxu0 0.0
      %418 = vmatprep.subr.mxu0 0.0
      %419 = vmatpush1.xpose.msra.mxu0 0.0
      %420 = vmatprep.subr.mxu0 0.0
      %421 = vmatpush1.xpose.msra.mxu0 0.0
      %422 = vmatprep.subr.mxu0 0.0
      %423 = vmatpush1.xpose.msra.mxu0 0.0
      %424 = vmatprep.subr.mxu0 0.0
      %425 = vmatpush1.xpose.msra.mxu0 0.0
      %426 = vmatprep.subr.mxu0 0.0
      %427 = vmatpush1.xpose.msra.mxu0 0.0
      %428 = vmatprep.subr.mxu0 0.0
      %429 = vmatpush1.xpose.msra.mxu0 0.0
      %430 = vmatprep.subr.mxu0 0.0
      %431 = vmatpush1.xpose.msra.mxu0 0.0
      %432 = vmatprep.subr.mxu0 0.0
      %433 = vmatpush1.xpose.msra.mxu0 0.0
      %434 = vmatprep.subr.mxu0 0.0
      %435 = vmatpush1.xpose.msra.mxu0 0.0
      %436 = vmatprep.subr.mxu0 0.0
      %437 = vmatpush1.xpose.msra.mxu0 0.0
      %438 = vmatprep.subr.mxu0 0.0
      %439 = vmatpush1.xpose.msra.mxu0 0.0
      %440 = vmatprep.subr.mxu0 0.0
      %441 = vmatpush1.xpose.msra.mxu0 0.0
      %442 = vmatprep.subr.mxu0 0.0
      %443 = vmatpush1.xpose.msra.mxu0 0.0
      %444 = vmatprep.subr.mxu0 0.0
      %445 = vmatpush1.xpose.msra.mxu0 0.0
      %446 = vmatprep.subr.mxu0 0.0
      %447 = vmatpush1.xpose.msra.mxu0 0.0
      %448 = vmatprep.subr.mxu0 0.0
      %449 = vmatpush1.xpose.msra.mxu0 0.0
      %450 = vmatprep.subr.mxu0 0.0
      %451 = vmatpush1.xpose.msra.mxu0 0.0
      %452 = vmatprep.subr.mxu0 0.0
      %453 = vmatpush1.xpose.msra.mxu0 0.0
      %454 = vmatprep.subr.mxu0 0.0
      %455 = vmatpush1.xpose.msra.mxu0 0.0
      %456 = vmatprep.subr.mxu0 0.0
      %457 = vmatpush1.xpose.msra.mxu0 0.0
      %458 = vmatprep.subr.mxu0 0.0
      %459 = vmatpush1.xpose.msra.mxu0 0.0
      %460 = vmatprep.subr.mxu0 0.0
      %461 = vmatpush1.xpose.msra.mxu0 0.0
      %462 = vmatprep.subr.mxu0 0.0
      %463 = vmatpush1.xpose.msra.mxu0 0.0
      %464 = vmatprep.subr.mxu0 0.0
      %465 = vmatpush1.xpose.msra.mxu0 0.0
      %466 = vmatprep.subr.mxu0 0.0
      %467 = vmatpush1.xpose.msra.mxu0 0.0
      %468 = vmatprep.subr.mxu0 0.0
      %469 = vmatpush1.xpose.msra.mxu0 0.0
      %470 = vmatprep.mubr.f32.mxu0 0.0
      %471 = vmatmul.mubr.f32.gmra.mrb[0].mxu0 %v402
      %v472 = vpop.f32.mrb[0].mxu0
      %v473 = vadd.f32 0.0, %v472
      %v474 = vpop.f32.mrb[0].mxu0
      %475 = vdwg.mxu0
      %477 = vrot.lane.b32.xlu0 %v397, 120
      %v478 = vpop.permute.xlu0 %477
      %v479 = vsel %vm401, %v397, 0
      %v481 = vsel %vm401, %v478, 0
      %483 = vmatprep.subr.mxu0 0.0
      %484 = vmatpush1.xpose.msra.mxu0 %v481
      %485 = vmatprep.subr.mxu0 0.0
      %486 = vmatpush1.xpose.msra.mxu0 0.0
      %487 = vmatprep.subr.mxu0 0.0
      %488 = vmatpush1.xpose.msra.mxu0 0.0
      %489 = vmatprep.subr.mxu0 0.0
      %490 = vmatpush1.xpose.msra.mxu0 0.0
      %491 = vmatprep.subr.mxu0 0.0
      %492 = vmatpush1.xpose.msra.mxu0 0.0
      %493 = vmatprep.subr.mxu0 0.0
      %494 = vmatpush1.xpose.msra.mxu0 0.0
      %495 = vmatprep.subr.mxu0 0.0
      %496 = vmatpush1.xpose.msra.mxu0 0.0
      %497 = vmatprep.subr.mxu0 0.0
      %498 = vmatpush1.xpose.msra.mxu0 0.0
      %499 = vmatprep.subr.mxu0 0.0
      %500 = vmatpush1.xpose.msra.mxu0 0.0
      %501 = vmatprep.subr.mxu0 0.0
      %502 = vmatpush1.xpose.msra.mxu0 0.0
      %503 = vmatprep.subr.mxu0 0.0
      %504 = vmatpush1.xpose.msra.mxu0 0.0
      %505 = vmatprep.subr.mxu0 0.0
      %506 = vmatpush1.xpose.msra.mxu0 0.0
      %507 = vmatprep.subr.mxu0 0.0
      %508 = vmatpush1.xpose.msra.mxu0 0.0
      %509 = vmatprep.subr.mxu0 0.0
      %510 = vmatpush1.xpose.msra.mxu0 0.0
      %511 = vmatprep.subr.mxu0 0.0
      %512 = vmatpush1.xpose.msra.mxu0 0.0
      %513 = vmatprep.subr.mxu0 0.0
      %514 = vmatpush1.xpose.msra.mxu0 0.0
      %515 = vmatprep.subr.mxu0 0.0
      %516 = vmatpush1.xpose.msra.mxu0 0.0
      %517 = vmatprep.subr.mxu0 0.0
      %518 = vmatpush1.xpose.msra.mxu0 0.0
      %519 = vmatprep.subr.mxu0 0.0
      %520 = vmatpush1.xpose.msra.mxu0 0.0
      %521 = vmatprep.subr.mxu0 0.0
      %522 = vmatpush1.xpose.msra.mxu0 0.0
      %523 = vmatprep.subr.mxu0 0.0
      %524 = vmatpush1.xpose.msra.mxu0 0.0
      %525 = vmatprep.subr.mxu0 0.0
      %526 = vmatpush1.xpose.msra.mxu0 0.0
      %527 = vmatprep.subr.mxu0 0.0
      %528 = vmatpush1.xpose.msra.mxu0 0.0
      %529 = vmatprep.subr.mxu0 0.0
      %530 = vmatpush1.xpose.msra.mxu0 0.0
      %531 = vmatprep.subr.mxu0 0.0
      %532 = vmatpush1.xpose.msra.mxu0 0.0
      %533 = vmatprep.subr.mxu0 0.0
      %534 = vmatpush1.xpose.msra.mxu0 0.0
      %535 = vmatprep.subr.mxu0 0.0
      %536 = vmatpush1.xpose.msra.mxu0 0.0
      %537 = vmatprep.subr.mxu0 0.0
      %538 = vmatpush1.xpose.msra.mxu0 0.0
      %539 = vmatprep.subr.mxu0 0.0
      %540 = vmatpush1.xpose.msra.mxu0 0.0
      %541 = vmatprep.subr.mxu0 0.0
      %542 = vmatpush1.xpose.msra.mxu0 0.0
      %543 = vmatprep.subr.mxu0 0.0
      %544 = vmatpush1.xpose.msra.mxu0 0.0
      %545 = vmatprep.subr.mxu0 0.0
      %546 = vmatpush1.xpose.msra.mxu0 0.0
      %547 = vmatprep.mubr.f32.mxu0 0.0
      %548 = vmatmul.mubr.f32.gmra.mrb[0].mxu0 %v479
      %v549 = vpop.f32.mrb[0].mxu0
      %v550 = vadd.f32 0.0, %v549
      %v551 = vpop.f32.mrb[0].mxu0
      %552 = vdwg.mxu0
      %v553 = vsel %vm401, %v473, -inf
      %554 = vmax.xlane.f32.xlu0 %v553
      %v555 = vpop.xlane.xlu0 %554
      %v556 = vsel %vm401, %v550, -inf
      %557 = vmax.xlane.f32.xlu0 %v556
      %v558 = vpop.xlane.xlu0 %557
      %v559 = vsub.f32 %v473, %v555
      %v560 = vsub.f32 %v550, %v558
      %v561 = vmul.f32 %v559, 1.442695
      %v562 = vpow.pop %v561
      %v563 = vmul.f32 %v560, 1.442695
      %v564 = vpow.pop %v563
      %v565 = vsel %vm401, %v562, 0.0
      %566 = vadd.xlane.f32.xlu0 %v565
      %v567 = vpop.xlane.xlu0 %566
      %v568 = vsel %vm401, %v564, 0.0
      %569 = vadd.xlane.f32.xlu0 %v568
      %v570 = vpop.xlane.xlu0 %569
      %v571 = vrcp.pop %v567
      %v572 = vrcp.pop %v570
      %v573 = vmul.f32 %v562, %v571
      %v574 = vmul.f32 %v564, %v572
      %v575 = vadd.f32 %v573, 0.0
      %v576 = vadd.f32 %v574, 0.0
      %577 = vrot.lane.b32.xlu0 %v396, 112
      %v578 = vpop.permute.xlu0 %577
      %v581 = vsel %vm401, %v573, 0
      %583 = vmatprep.subr.mxu0 0.0
      %584 = vmatpush1.msra.mxu0 %v578
      %585 = vmatprep.subr.mxu0 0.0
      %586 = vmatpush1.msra.mxu0 0.0
      %587 = vmatprep.subr.mxu0 0.0
      %588 = vmatpush1.msra.mxu0 0.0
      %589 = vmatprep.subr.mxu0 0.0
      %590 = vmatpush1.msra.mxu0 0.0
      %591 = vmatprep.subr.mxu0 0.0
      %592 = vmatpush1.msra.mxu0 0.0
      %593 = vmatprep.subr.mxu0 0.0
      %594 = vmatpush1.msra.mxu0 0.0
      %595 = vmatprep.subr.mxu0 0.0
      %596 = vmatpush1.msra.mxu0 0.0
      %597 = vmatprep.subr.mxu0 0.0
      %598 = vmatpush1.msra.mxu0 0.0
      %599 = vmatprep.subr.mxu0 0.0
      %600 = vmatpush1.msra.mxu0 0.0
      %601 = vmatprep.subr.mxu0 0.0
      %602 = vmatpush1.msra.mxu0 0.0
      %603 = vmatprep.subr.mxu0 0.0
      %604 = vmatpush1.msra.mxu0 0.0
      %605 = vmatprep.subr.mxu0 0.0
      %606 = vmatpush1.msra.mxu0 0.0
      %607 = vmatprep.subr.mxu0 0.0
      %608 = vmatpush1.msra.mxu0 0.0
      %609 = vmatprep.subr.mxu0 0.0
      %610 = vmatpush1.msra.mxu0 0.0
      %611 = vmatprep.subr.mxu0 0.0
      %612 = vmatpush1.msra.mxu0 0.0
      %613 = vmatprep.subr.mxu0 0.0
      %614 = vmatpush1.msra.mxu0 0.0
      %615 = vmatprep.subr.mxu0 0.0
      %616 = vmatpush1.msra.mxu0 0.0
      %617 = vmatprep.subr.mxu0 0.0
      %618 = vmatpush1.msra.mxu0 0.0
      %619 = vmatprep.subr.mxu0 0.0
      %620 = vmatpush1.msra.mxu0 0.0
      %621 = vmatprep.subr.mxu0 0.0
      %622 = vmatpush1.msra.mxu0 0.0
      %623 = vmatprep.subr.mxu0 0.0
      %624 = vmatpush1.msra.mxu0 0.0
      %625 = vmatprep.subr.mxu0 0.0
      %626 = vmatpush1.msra.mxu0 0.0
      %627 = vmatprep.subr.mxu0 0.0
      %628 = vmatpush1.msra.mxu0 0.0
      %629 = vmatprep.subr.mxu0 0.0
      %630 = vmatpush1.msra.mxu0 0.0
      %631 = vmatprep.subr.mxu0 0.0
      %632 = vmatpush1.msra.mxu0 0.0
      %633 = vmatprep.subr.mxu0 0.0
      %634 = vmatpush1.msra.mxu0 0.0
      %635 = vmatprep.subr.mxu0 0.0
      %636 = vmatpush1.msra.mxu0 0.0
      %637 = vmatprep.subr.mxu0 0.0
      %638 = vmatpush1.msra.mxu0 0.0
      %639 = vmatprep.subr.mxu0 0.0
      %640 = vmatpush1.msra.mxu0 0.0
      %641 = vmatprep.subr.mxu0 0.0
      %642 = vmatpush1.msra.mxu0 0.0
      %643 = vmatprep.subr.mxu0 0.0
      %644 = vmatpush1.msra.mxu0 0.0
      %645 = vmatprep.subr.mxu0 0.0
      %646 = vmatpush1.msra.mxu0 0.0
      %647 = vmatprep.mubr.f32.mxu0 0.0
      %648 = vmatmul.mubr.f32.gmra.mrb[0].mxu0 %v581
      %v649 = vpop.f32.mrb[0].mxu0
      %v650 = vadd.f32 0.0, %v649
      %v651 = vpop.f32.mrb[0].mxu0
      %652 = vdwg.mxu0
      %653 = vrot.lane.b32.xlu0 %v397, 112
      %v654 = vpop.permute.xlu0 %653
      %v657 = vsel %vm401, %v574, 0
      %659 = vmatprep.subr.mxu0 0.0
      %660 = vmatpush1.msra.mxu0 %v654
      %661 = vmatprep.subr.mxu0 0.0
      %662 = vmatpush1.msra.mxu0 0.0
      %663 = vmatprep.subr.mxu0 0.0
      %664 = vmatpush1.msra.mxu0 0.0
      %665 = vmatprep.subr.mxu0 0.0
      %666 = vmatpush1.msra.mxu0 0.0
      %667 = vmatprep.subr.mxu0 0.0
      %668 = vmatpush1.msra.mxu0 0.0
      %669 = vmatprep.subr.mxu0 0.0
      %670 = vmatpush1.msra.mxu0 0.0
      %671 = vmatprep.subr.mxu0 0.0
      %672 = vmatpush1.msra.mxu0 0.0
      %673 = vmatprep.subr.mxu0 0.0
      %674 = vmatpush1.msra.mxu0 0.0
      %675 = vmatprep.subr.mxu0 0.0
      %676 = vmatpush1.msra.mxu0 0.0
      %677 = vmatprep.subr.mxu0 0.0
      %678 = vmatpush1.msra.mxu0 0.0
      %679 = vmatprep.subr.mxu0 0.0
      %680 = vmatpush1.msra.mxu0 0.0
      %681 = vmatprep.subr.mxu0 0.0
      %682 = vmatpush1.msra.mxu0 0.0
      %683 = vmatprep.subr.mxu0 0.0
      %684 = vmatpush1.msra.mxu0 0.0
      %685 = vmatprep.subr.mxu0 0.0
      %686 = vmatpush1.msra.mxu0 0.0
      %687 = vmatprep.subr.mxu0 0.0
      %688 = vmatpush1.msra.mxu0 0.0
      %689 = vmatprep.subr.mxu0 0.0
      %690 = vmatpush1.msra.mxu0 0.0
      %691 = vmatprep.subr.mxu0 0.0
      %692 = vmatpush1.msra.mxu0 0.0
      %693 = vmatprep.subr.mxu0 0.0
      %694 = vmatpush1.msra.mxu0 0.0
      %695 = vmatprep.subr.mxu0 0.0
      %696 = vmatpush1.msra.mxu0 0.0
      %697 = vmatprep.subr.mxu0 0.0
      %698 = vmatpush1.msra.mxu0 0.0
      %699 = vmatprep.subr.mxu0 0.0
      %700 = vmatpush1.msra.mxu0 0.0
      %701 = vmatprep.subr.mxu0 0.0
      %702 = vmatpush1.msra.mxu0 0.0
      %703 = vmatprep.subr.mxu0 0.0
      %704 = vmatpush1.msra.mxu0 0.0
      %705 = vmatprep.subr.mxu0 0.0
      %706 = vmatpush1.msra.mxu0 0.0
      %707 = vmatprep.subr.mxu0 0.0
      %708 = vmatpush1.msra.mxu0 0.0
      %709 = vmatprep.subr.mxu0 0.0
      %710 = vmatpush1.msra.mxu0 0.0
      %711 = vmatprep.subr.mxu0 0.0
      %712 = vmatpush1.msra.mxu0 0.0
      %713 = vmatprep.subr.mxu0 0.0
      %714 = vmatpush1.msra.mxu0 0.0
      %715 = vmatprep.subr.mxu0 0.0
      %716 = vmatpush1.msra.mxu0 0.0
      %717 = vmatprep.subr.mxu0 0.0
      %718 = vmatpush1.msra.mxu0 0.0
      %719 = vmatprep.subr.mxu0 0.0
      %720 = vmatpush1.msra.mxu0 0.0
      %721 = vmatprep.subr.mxu0 0.0
      %722 = vmatpush1.msra.mxu0 0.0
      %723 = vmatprep.mubr.f32.mxu0 0.0
      %724 = vmatmul.mubr.f32.gmra.mrb[0].mxu0 %v657
      %v725 = vpop.f32.mrb[0].mxu0
      %v726 = vadd.f32 0.0, %v725
      %v727 = vpop.f32.mrb[0].mxu0
      %728 = vdwg.mxu0
      %729 = vst.msk [vmem:[#allocation3] sm:$0xff] %vm401, %v650
      %730 = vst.msk [vmem:[#allocation3 + $0x8] sm:$0xff] %vm401, %v726
      %v731 = vld [vmem:[#allocation2] sm:$0xff]
      %v732 = vld [vmem:[#allocation2 + $0x8] sm:$0xff]
      %734 = vrot.lane.b32.xlu0 %v731, 104
      %v735 = vpop.permute.xlu0 %734
      %736 = vrot.lane.b32.xlu0 %v731, 96
      %v737 = vpop.permute.xlu0 %736
      %v738 = vsel %vm401, %v735, 0
      %v740 = vsel %vm401, %v737, 0
      %742 = vmatprep.subr.mxu0 0.0
      %743 = vmatpush1.xpose.msra.mxu0 %v740
      %744 = vmatprep.subr.mxu0 0.0
      %745 = vmatpush1.xpose.msra.mxu0 0.0
      %746 = vmatprep.subr.mxu0 0.0
      %747 = vmatpush1.xpose.msra.mxu0 0.0
      %748 = vmatprep.subr.mxu0 0.0
      %749 = vmatpush1.xpose.msra.mxu0 0.0
      %750 = vmatprep.subr.mxu0 0.0
      %751 = vmatpush1.xpose.msra.mxu0 0.0
      %752 = vmatprep.subr.mxu0 0.0
      %753 = vmatpush1.xpose.msra.mxu0 0.0
      %754 = vmatprep.subr.mxu0 0.0
      %755 = vmatpush1.xpose.msra.mxu0 0.0
      %756 = vmatprep.subr.mxu0 0.0
      %757 = vmatpush1.xpose.msra.mxu0 0.0
      %758 = vmatprep.subr.mxu0 0.0
      %759 = vmatpush1.xpose.msra.mxu0 0.0
      %760 = vmatprep.subr.mxu0 0.0
      %761 = vmatpush1.xpose.msra.mxu0 0.0
      %762 = vmatprep.subr.mxu0 0.0
      %763 = vmatpush1.xpose.msra.mxu0 0.0
      %764 = vmatprep.subr.mxu0 0.0
      %765 = vmatpush1.xpose.msra.mxu0 0.0
      %766 = vmatprep.subr.mxu0 0.0
      %767 = vmatpush1.xpose.msra.mxu0 0.0
      %768 = vmatprep.subr.mxu0 0.0
      %769 = vmatpush1.xpose.msra.mxu0 0.0
      %770 = vmatprep.subr.mxu0 0.0
      %771 = vmatpush1.xpose.msra.mxu0 0.0
      %772 = vmatprep.subr.mxu0 0.0
      %773 = vmatpush1.xpose.msra.mxu0 0.0
      %774 = vmatprep.subr.mxu0 0.0
      %775 = vmatpush1.xpose.msra.mxu0 0.0
      %776 = vmatprep.subr.mxu0 0.0
      %777 = vmatpush1.xpose.msra.mxu0 0.0
      %778 = vmatprep.subr.mxu0 0.0
      %779 = vmatpush1.xpose.msra.mxu0 0.0
      %780 = vmatprep.subr.mxu0 0.0
      %781 = vmatpush1.xpose.msra.mxu0 0.0
      %782 = vmatprep.subr.mxu0 0.0
      %783 = vmatpush1.xpose.msra.mxu0 0.0
      %784 = vmatprep.subr.mxu0 0.0
      %785 = vmatpush1.xpose.msra.mxu0 0.0
      %786 = vmatprep.subr.mxu0 0.0
      %787 = vmatpush1.xpose.msra.mxu0 0.0
      %788 = vmatprep.subr.mxu0 0.0
      %789 = vmatpush1.xpose.msra.mxu0 0.0
      %790 = vmatprep.subr.mxu0 0.0
      %791 = vmatpush1.xpose.msra.mxu0 0.0
      %792 = vmatprep.subr.mxu0 0.0
      %793 = vmatpush1.xpose.msra.mxu0 0.0
      %794 = vmatprep.subr.mxu0 0.0
      %795 = vmatpush1.xpose.msra.mxu0 0.0
      %796 = vmatprep.subr.mxu0 0.0
      %797 = vmatpush1.xpose.msra.mxu0 0.0
      %798 = vmatprep.subr.mxu0 0.0
      %799 = vmatpush1.xpose.msra.mxu0 0.0
      %800 = vmatprep.subr.mxu0 0.0
      %801 = vmatpush1.xpose.msra.mxu0 0.0
      %802 = vmatprep.subr.mxu0 0.0
      %803 = vmatpush1.xpose.msra.mxu0 0.0
      %804 = vmatprep.subr.mxu0 0.0
      %805 = vmatpush1.xpose.msra.mxu0 0.0
      %806 = vmatprep.mubr.f32.mxu0 0.0
      %807 = vmatmul.mubr.f32.gmra.mrb[0].mxu0 %v738
      %v808 = vpop.f32.mrb[0].mxu0
      %v809 = vadd.f32 0.0, %v808
      %v810 = vpop.f32.mrb[0].mxu0
      %811 = vdwg.mxu0
      %813 = vrot.lane.b32.xlu0 %v732, 104
      %v814 = vpop.permute.xlu0 %813
      %815 = vrot.lane.b32.xlu0 %v732, 96
      %v816 = vpop.permute.xlu0 %815
      %v817 = vsel %vm401, %v814, 0
      %v819 = vsel %vm401, %v816, 0
      %821 = vmatprep.subr.mxu0 0.0
      %822 = vmatpush1.xpose.msra.mxu0 %v819
      %823 = vmatprep.subr.mxu0 0.0
      %824 = vmatpush1.xpose.msra.mxu0 0.0
      %825 = vmatprep.subr.mxu0 0.0
      %826 = vmatpush1.xpose.msra.mxu0 0.0
      %827 = vmatprep.subr.mxu0 0.0
      %828 = vmatpush1.xpose.msra.mxu0 0.0
      %829 = vmatprep.subr.mxu0 0.0
      %830 = vmatpush1.xpose.msra.mxu0 0.0
      %831 = vmatprep.subr.mxu0 0.0
      %832 = vmatpush1.xpose.msra.mxu0 0.0
      %833 = vmatprep.subr.mxu0 0.0
      %834 = vmatpush1.xpose.msra.mxu0 0.0
      %835 = vmatprep.subr.mxu0 0.0
      %836 = vmatpush1.xpose.msra.mxu0 0.0
      %837 = vmatprep.subr.mxu0 0.0
      %838 = vmatpush1.xpose.msra.mxu0 0.0
      %839 = vmatprep.subr.mxu0 0.0
      %840 = vmatpush1.xpose.msra.mxu0 0.0
      %841 = vmatprep.subr.mxu0 0.0
      %842 = vmatpush1.xpose.msra.mxu0 0.0
      %843 = vmatprep.subr.mxu0 0.0
      %844 = vmatpush1.xpose.msra.mxu0 0.0
      %845 = vmatprep.subr.mxu0 0.0
      %846 = vmatpush1.xpose.msra.mxu0 0.0
      %847 = vmatprep.subr.mxu0 0.0
      %848 = vmatpush1.xpose.msra.mxu0 0.0
      %849 = vmatprep.subr.mxu0 0.0
      %850 = vmatpush1.xpose.msra.mxu0 0.0
      %851 = vmatprep.subr.mxu0 0.0
      %852 = vmatpush1.xpose.msra.mxu0 0.0
      %853 = vmatprep.subr.mxu0 0.0
      %854 = vmatpush1.xpose.msra.mxu0 0.0
      %855 = vmatprep.subr.mxu0 0.0
      %856 = vmatpush1.xpose.msra.mxu0 0.0
      %857 = vmatprep.subr.mxu0 0.0
      %858 = vmatpush1.xpose.msra.mxu0 0.0
      %859 = vmatprep.subr.mxu0 0.0
      %860 = vmatpush1.xpose.msra.mxu0 0.0
      %861 = vmatprep.subr.mxu0 0.0
      %862 = vmatpush1.xpose.msra.mxu0 0.0
      %863 = vmatprep.subr.mxu0 0.0
      %864 = vmatpush1.xpose.msra.mxu0 0.0
      %865 = vmatprep.subr.mxu0 0.0
      %866 = vmatpush1.xpose.msra.mxu0 0.0
      %867 = vmatprep.subr.mxu0 0.0
      %868 = vmatpush1.xpose.msra.mxu0 0.0
      %869 = vmatprep.subr.mxu0 0.0
      %870 = vmatpush1.xpose.msra.mxu0 0.0
      %871 = vmatprep.subr.mxu0 0.0
      %872 = vmatpush1.xpose.msra.mxu0 0.0
      %873 = vmatprep.subr.mxu0 0.0
      %874 = vmatpush1.xpose.msra.mxu0 0.0
      %875 = vmatprep.subr.mxu0 0.0
      %876 = vmatpush1.xpose.msra.mxu0 0.0
      %877 = vmatprep.subr.mxu0 0.0
      %878 = vmatpush1.xpose.msra.mxu0 0.0
      %879 = vmatprep.subr.mxu0 0.0
      %880 = vmatpush1.xpose.msra.mxu0 0.0
      %881 = vmatprep.subr.mxu0 0.0
      %882 = vmatpush1.xpose.msra.mxu0 0.0
      %883 = vmatprep.subr.mxu0 0.0
      %884 = vmatpush1.xpose.msra.mxu0 0.0
      %885 = vmatprep.mubr.f32.mxu0 0.0
      %886 = vmatmul.mubr.f32.gmra.mrb[0].mxu0 %v817
      %v887 = vpop.f32.mrb[0].mxu0
      %v888 = vadd.f32 0.0, %v887
      %v889 = vpop.f32.mrb[0].mxu0
      %890 = vdwg.mxu0
      %v891 = vsel %vm401, %v809, -inf
      %892 = vmax.xlane.f32.xlu0 %v891
      %v893 = vpop.xlane.xlu0 %892
      %v894 = vsel %vm401, %v888, -inf
      %895 = vmax.xlane.f32.xlu0 %v894
      %v896 = vpop.xlane.xlu0 %895
      %v897 = vsub.f32 %v809, %v893
      %v898 = vsub.f32 %v888, %v896
      %v899 = vmul.f32 %v897, 1.442695
      %v900 = vpow.pop %v899
      %v901 = vmul.f32 %v898, 1.442695
      %v902 = vpow.pop %v901
      %v903 = vsel %vm401, %v900, 0.0
      %904 = vadd.xlane.f32.xlu0 %v903
      %v905 = vpop.xlane.xlu0 %904
      %v906 = vsel %vm401, %v902, 0.0
      %907 = vadd.xlane.f32.xlu0 %v906
      %v908 = vpop.xlane.xlu0 %907
      %v909 = vrcp.pop %v905
      %v910 = vrcp.pop %v908
      %v911 = vmul.f32 %v900, %v909
      %v912 = vmul.f32 %v902, %v910
      %v913 = vadd.f32 %v575, %v911
      %v914 = vadd.f32 %v576, %v912
      %915 = vrot.lane.b32.xlu0 %v731, 88
      %v916 = vpop.permute.xlu0 %915
      %v919 = vsel %vm401, %v911, 0
      %921 = vmatprep.subr.mxu0 0.0
      %922 = vmatpush1.msra.mxu0 %v916
      %923 = vmatprep.subr.mxu0 0.0
      %924 = vmatpush1.msra.mxu0 0.0
      %925 = vmatprep.subr.mxu0 0.0
      %926 = vmatpush1.msra.mxu0 0.0
      %927 = vmatprep.subr.mxu0 0.0
      %928 = vmatpush1.msra.mxu0 0.0
      %929 = vmatprep.subr.mxu0 0.0
      %930 = vmatpush1.msra.mxu0 0.0
      %931 = vmatprep.subr.mxu0 0.0
      %932 = vmatpush1.msra.mxu0 0.0
      %933 = vmatprep.subr.mxu0 0.0
      %934 = vmatpush1.msra.mxu0 0.0
      %935 = vmatprep.subr.mxu0 0.0
      %936 = vmatpush1.msra.mxu0 0.0
      %937 = vmatprep.subr.mxu0 0.0
      %938 = vmatpush1.msra.mxu0 0.0
      %939 = vmatprep.subr.mxu0 0.0
      %940 = vmatpush1.msra.mxu0 0.0
      %941 = vmatprep.subr.mxu0 0.0
      %942 = vmatpush1.msra.mxu0 0.0
      %943 = vmatprep.subr.mxu0 0.0
      %944 = vmatpush1.msra.mxu0 0.0
      %945 = vmatprep.subr.mxu0 0.0
      %946 = vmatpush1.msra.mxu0 0.0
      %947 = vmatprep.subr.mxu0 0.0
      %948 = vmatpush1.msra.mxu0 0.0
      %949 = vmatprep.subr.mxu0 0.0
      %950 = vmatpush1.msra.mxu0 0.0
      %951 = vmatprep.subr.mxu0 0.0
      %952 = vmatpush1.msra.mxu0 0.0
      %953 = vmatprep.subr.mxu0 0.0
      %954 = vmatpush1.msra.mxu0 0.0
      %955 = vmatprep.subr.mxu0 0.0
      %956 = vmatpush1.msra.mxu0 0.0
      %957 = vmatprep.subr.mxu0 0.0
      %958 = vmatpush1.msra.mxu0 0.0
      %959 = vmatprep.subr.mxu0 0.0
      %960 = vmatpush1.msra.mxu0 0.0
      %961 = vmatprep.subr.mxu0 0.0
      %962 = vmatpush1.msra.mxu0 0.0
      %963 = vmatprep.subr.mxu0 0.0
      %964 = vmatpush1.msra.mxu0 0.0
      %965 = vmatprep.subr.mxu0 0.0
      %966 = vmatpush1.msra.mxu0 0.0
      %967 = vmatprep.subr.mxu0 0.0
      %968 = vmatpush1.msra.mxu0 0.0
      %969 = vmatprep.subr.mxu0 0.0
      %970 = vmatpush1.msra.mxu0 0.0
      %971 = vmatprep.subr.mxu0 0.0
      %972 = vmatpush1.msra.mxu0 0.0
      %973 = vmatprep.subr.mxu0 0.0
      %974 = vmatpush1.msra.mxu0 0.0
      %975 = vmatprep.subr.mxu0 0.0
      %976 = vmatpush1.msra.mxu0 0.0
      %977 = vmatprep.subr.mxu0 0.0
      %978 = vmatpush1.msra.mxu0 0.0
      %979 = vmatprep.subr.mxu0 0.0
      %980 = vmatpush1.msra.mxu0 0.0
      %981 = vmatprep.subr.mxu0 0.0
      %982 = vmatpush1.msra.mxu0 0.0
      %983 = vmatprep.subr.mxu0 0.0
      %984 = vmatpush1.msra.mxu0 0.0
      %985 = vmatprep.mubr.f32.mxu0 0.0
      %986 = vmatmul.mubr.f32.gmra.mrb[0].mxu0 %v919
      %v987 = vpop.f32.mrb[0].mxu0
      %v988 = vadd.f32 0.0, %v987
      %v989 = vpop.f32.mrb[0].mxu0
      %990 = vdwg.mxu0
      %991 = vrot.lane.b32.xlu0 %v732, 88
      %v992 = vpop.permute.xlu0 %991
      %v995 = vsel %vm401, %v912, 0
      %997 = vmatprep.subr.mxu0 0.0
      %998 = vmatpush1.msra.mxu0 %v992
      %999 = vmatprep.subr.mxu0 0.0
      %1000 = vmatpush1.msra.mxu0 0.0
      %1001 = vmatprep.subr.mxu0 0.0
      %1002 = vmatpush1.msra.mxu0 0.0
      %1003 = vmatprep.subr.mxu0 0.0
      %1004 = vmatpush1.msra.mxu0 0.0
      %1005 = vmatprep.subr.mxu0 0.0
      %1006 = vmatpush1.msra.mxu0 0.0
      %1007 = vmatprep.subr.mxu0 0.0
      %1008 = vmatpush1.msra.mxu0 0.0
      %1009 = vmatprep.subr.mxu0 0.0
      %1010 = vmatpush1.msra.mxu0 0.0
      %1011 = vmatprep.subr.mxu0 0.0
      %1012 = vmatpush1.msra.mxu0 0.0
      %1013 = vmatprep.subr.mxu0 0.0
      %1014 = vmatpush1.msra.mxu0 0.0
      %1015 = vmatprep.subr.mxu0 0.0
      %1016 = vmatpush1.msra.mxu0 0.0
      %1017 = vmatprep.subr.mxu0 0.0
      %1018 = vmatpush1.msra.mxu0 0.0
      %1019 = vmatprep.subr.mxu0 0.0
      %1020 = vmatpush1.msra.mxu0 0.0
      %1021 = vmatprep.subr.mxu0 0.0
      %1022 = vmatpush1.msra.mxu0 0.0
      %1023 = vmatprep.subr.mxu0 0.0
      %1024 = vmatpush1.msra.mxu0 0.0
      %1025 = vmatprep.subr.mxu0 0.0
      %1026 = vmatpush1.msra.mxu0 0.0
      %1027 = vmatprep.subr.mxu0 0.0
      %1028 = vmatpush1.msra.mxu0 0.0
      %1029 = vmatprep.subr.mxu0 0.0
      %1030 = vmatpush1.msra.mxu0 0.0
      %1031 = vmatprep.subr.mxu0 0.0
      %1032 = vmatpush1.msra.mxu0 0.0
      %1033 = vmatprep.subr.mxu0 0.0
      %1034 = vmatpush1.msra.mxu0 0.0
      %1035 = vmatprep.subr.mxu0 0.0
      %1036 = vmatpush1.msra.mxu0 0.0
      %1037 = vmatprep.subr.mxu0 0.0
      %1038 = vmatpush1.msra.mxu0 0.0
      %1039 = vmatprep.subr.mxu0 0.0
      %1040 = vmatpush1.msra.mxu0 0.0
      %1041 = vmatprep.subr.mxu0 0.0
      %1042 = vmatpush1.msra.mxu0 0.0
      %1043 = vmatprep.subr.mxu0 0.0
      %1044 = vmatpush1.msra.mxu0 0.0
      %1045 = vmatprep.subr.mxu0 0.0
      %1046 = vmatpush1.msra.mxu0 0.0
      %1047 = vmatprep.subr.mxu0 0.0
      %1048 = vmatpush1.msra.mxu0 0.0
      %1049 = vmatprep.subr.mxu0 0.0
      %1050 = vmatpush1.msra.mxu0 0.0
      %1051 = vmatprep.subr.mxu0 0.0
      %1052 = vmatpush1.msra.mxu0 0.0
      %1053 = vmatprep.subr.mxu0 0.0
      %1054 = vmatpush1.msra.mxu0 0.0
      %1055 = vmatprep.subr.mxu0 0.0
      %1056 = vmatpush1.msra.mxu0 0.0
      %1057 = vmatprep.subr.mxu0 0.0
      %1058 = vmatpush1.msra.mxu0 0.0
      %1059 = vmatprep.subr.mxu0 0.0
      %1060 = vmatpush1.msra.mxu0 0.0
      %1061 = vmatprep.mubr.f32.mxu0 0.0
      %1062 = vmatmul.mubr.f32.gmra.mrb[0].mxu0 %v995
      %v1063 = vpop.f32.mrb[0].mxu0
      %v1064 = vadd.f32 0.0, %v1063
      %v1065 = vpop.f32.mrb[0].mxu0
      %1066 = vdwg.mxu0
      %1069 = vrot.lane.b32.xlu0 %v988, 8
      %v1070 = vpop.permute.xlu0 %1069
      %1071 = vrot.lane.b32.xlu0 %v1064, 8
      %v1072 = vpop.permute.xlu0 %1071
      %vm1075 = vcmask 130112
      %1076 = vst.msk [vmem:[#allocation3] sm:$0xff] %vm1075, %v1070
      %1077 = vst.msk [vmem:[#allocation3 + $0x8] sm:$0xff] %vm1075, %v1072
      %v1078 = vld [vmem:[#allocation2] sm:$0xff]
      %v1079 = vld [vmem:[#allocation2 + $0x8] sm:$0xff]
      %1081 = vrot.lane.b32.xlu0 %v1078, 80
      %v1082 = vpop.permute.xlu0 %1081
      %1083 = vrot.lane.b32.xlu0 %v1078, 72
      %v1084 = vpop.permute.xlu0 %1083
      %v1085 = vsel %vm401, %v1082, 0
      %v1087 = vsel %vm401, %v1084, 0
      %1089 = vmatprep.subr.mxu0 0.0
      %1090 = vmatpush1.xpose.msra.mxu0 %v1087
      %1091 = vmatprep.subr.mxu0 0.0
      %1092 = vmatpush1.xpose.msra.mxu0 0.0
      %1093 = vmatprep.subr.mxu0 0.0
      %1094 = vmatpush1.xpose.msra.mxu0 0.0
      %1095 = vmatprep.subr.mxu0 0.0
      %1096 = vmatpush1.xpose.msra.mxu0 0.0
      %1097 = vmatprep.subr.mxu0 0.0
      %1098 = vmatpush1.xpose.msra.mxu0 0.0
      %1099 = vmatprep.subr.mxu0 0.0
      %1100 = vmatpush1.xpose.msra.mxu0 0.0
      %1101 = vmatprep.subr.mxu0 0.0
      %1102 = vmatpush1.xpose.msra.mxu0 0.0
      %1103 = vmatprep.subr.mxu0 0.0
      %1104 = vmatpush1.xpose.msra.mxu0 0.0
      %1105 = vmatprep.subr.mxu0 0.0
      %1106 = vmatpush1.xpose.msra.mxu0 0.0
      %1107 = vmatprep.subr.mxu0 0.0
      %1108 = vmatpush1.xpose.msra.mxu0 0.0
      %1109 = vmatprep.subr.mxu0 0.0
      %1110 = vmatpush1.xpose.msra.mxu0 0.0
      %1111 = vmatprep.subr.mxu0 0.0
      %1112 = vmatpush1.xpose.msra.mxu0 0.0
      %1113 = vmatprep.subr.mxu0 0.0
      %1114 = vmatpush1.xpose.msra.mxu0 0.0
      %1115 = vmatprep.subr.mxu0 0.0
      %1116 = vmatpush1.xpose.msra.mxu0 0.0
      %1117 = vmatprep.subr.mxu0 0.0
      %1118 = vmatpush1.xpose.msra.mxu0 0.0
      %1119 = vmatprep.subr.mxu0 0.0
      %1120 = vmatpush1.xpose.msra.mxu0 0.0
      %1121 = vmatprep.subr.mxu0 0.0
      %1122 = vmatpush1.xpose.msra.mxu0 0.0
      %1123 = vmatprep.subr.mxu0 0.0
      %1124 = vmatpush1.xpose.msra.mxu0 0.0
      %1125 = vmatprep.subr.mxu0 0.0
      %1126 = vmatpush1.xpose.msra.mxu0 0.0
      %1127 = vmatprep.subr.mxu0 0.0
      %1128 = vmatpush1.xpose.msra.mxu0 0.0
      %1129 = vmatprep.subr.mxu0 0.0
      %1130 = vmatpush1.xpose.msra.mxu0 0.0
      %1131 = vmatprep.subr.mxu0 0.0
      %1132 = vmatpush1.xpose.msra.mxu0 0.0
      %1133 = vmatprep.subr.mxu0 0.0
      %1134 = vmatpush1.xpose.msra.mxu0 0.0
      %1135 = vmatprep.subr.mxu0 0.0
      %1136 = vmatpush1.xpose.msra.mxu0 0.0
      %1137 = vmatprep.subr.mxu0 0.0
      %1138 = vmatpush1.xpose.msra.mxu0 0.0
      %1139 = vmatprep.subr.mxu0 0.0
      %1140 = vmatpush1.xpose.msra.mxu0 0.0
      %1141 = vmatprep.subr.mxu0 0.0
      %1142 = vmatpush1.xpose.msra.mxu0 0.0
      %1143 = vmatprep.subr.mxu0 0.0
      %1144 = vmatpush1.xpose.msra.mxu0 0.0
      %1145 = vmatprep.subr.mxu0 0.0
      %1146 = vmatpush1.xpose.msra.mxu0 0.0
      %1147 = vmatprep.subr.mxu0 0.0
      %1148 = vmatpush1.xpose.msra.mxu0 0.0
      %1149 = vmatprep.subr.mxu0 0.0
      %1150 = vmatpush1.xpose.msra.mxu0 0.0
      %1151 = vmatprep.subr.mxu0 0.0
      %1152 = vmatpush1.xpose.msra.mxu0 0.0
      %1153 = vmatprep.mubr.f32.mxu0 0.0
      %1154 = vmatmul.mubr.f32.gmra.mrb[0].mxu0 %v1085
      %v1155 = vpop.f32.mrb[0].mxu0
      %v1156 = vadd.f32 0.0, %v1155
      %v1157 = vpop.f32.mrb[0].mxu0
      %1158 = vdwg.mxu0
      %1160 = vrot.lane.b32.xlu0 %v1079, 80
      %v1161 = vpop.permute.xlu0 %1160
      %1162 = vrot.lane.b32.xlu0 %v1079, 72
      %v1163 = vpop.permute.xlu0 %1162
      %v1164 = vsel %vm401, %v1161, 0
      %v1166 = vsel %vm401, %v1163, 0
      %1168 = vmatprep.subr.mxu0 0.0
      %1169 = vmatpush1.xpose.msra.mxu0 %v1166
      %1170 = vmatprep.subr.mxu0 0.0
      %1171 = vmatpush1.xpose.msra.mxu0 0.0
      %1172 = vmatprep.subr.mxu0 0.0
      %1173 = vmatpush1.xpose.msra.mxu0 0.0
      %1174 = vmatprep.subr.mxu0 0.0
      %1175 = vmatpush1.xpose.msra.mxu0 0.0
      %1176 = vmatprep.subr.mxu0 0.0
      %1177 = vmatpush1.xpose.msra.mxu0 0.0
      %1178 = vmatprep.subr.mxu0 0.0
      %1179 = vmatpush1.xpose.msra.mxu0 0.0
      %1180 = vmatprep.subr.mxu0 0.0
      %1181 = vmatpush1.xpose.msra.mxu0 0.0
      %1182 = vmatprep.subr.mxu0 0.0
      %1183 = vmatpush1.xpose.msra.mxu0 0.0
      %1184 = vmatprep.subr.mxu0 0.0
      %1185 = vmatpush1.xpose.msra.mxu0 0.0
      %1186 = vmatprep.subr.mxu0 0.0
      %1187 = vmatpush1.xpose.msra.mxu0 0.0
      %1188 = vmatprep.subr.mxu0 0.0
      %1189 = vmatpush1.xpose.msra.mxu0 0.0
      %1190 = vmatprep.subr.mxu0 0.0
      %1191 = vmatpush1.xpose.msra.mxu0 0.0
      %1192 = vmatprep.subr.mxu0 0.0
      %1193 = vmatpush1.xpose.msra.mxu0 0.0
      %1194 = vmatprep.subr.mxu0 0.0
      %1195 = vmatpush1.xpose.msra.mxu0 0.0
      %1196 = vmatprep.subr.mxu0 0.0
      %1197 = vmatpush1.xpose.msra.mxu0 0.0
      %1198 = vmatprep.subr.mxu0 0.0
      %1199 = vmatpush1.xpose.msra.mxu0 0.0
      %1200 = vmatprep.subr.mxu0 0.0
      %1201 = vmatpush1.xpose.msra.mxu0 0.0
      %1202 = vmatprep.subr.mxu0 0.0
      %1203 = vmatpush1.xpose.msra.mxu0 0.0
      %1204 = vmatprep.subr.mxu0 0.0
      %1205 = vmatpush1.xpose.msra.mxu0 0.0
      %1206 = vmatprep.subr.mxu0 0.0
      %1207 = vmatpush1.xpose.msra.mxu0 0.0
      %1208 = vmatprep.subr.mxu0 0.0
      %1209 = vmatpush1.xpose.msra.mxu0 0.0
      %1210 = vmatprep.subr.mxu0 0.0
      %1211 = vmatpush1.xpose.msra.mxu0 0.0
      %1212 = vmatprep.subr.mxu0 0.0
      %1213 = vmatpush1.xpose.msra.mxu0 0.0
      %1214 = vmatprep.subr.mxu0 0.0
      %1215 = vmatpush1.xpose.msra.mxu0 0.0
      %1216 = vmatprep.subr.mxu0 0.0
      %1217 = vmatpush1.xpose.msra.mxu0 0.0
      %1218 = vmatprep.subr.mxu0 0.0
      %1219 = vmatpush1.xpose.msra.mxu0 0.0
      %1220 = vmatprep.subr.mxu0 0.0
      %1221 = vmatpush1.xpose.msra.mxu0 0.0
      %1222 = vmatprep.subr.mxu0 0.0
      %1223 = vmatpush1.xpose.msra.mxu0 0.0
      %1224 = vmatprep.subr.mxu0 0.0
      %1225 = vmatpush1.xpose.msra.mxu0 0.0
      %1226 = vmatprep.subr.mxu0 0.0
      %1227 = vmatpush1.xpose.msra.mxu0 0.0
      %1228 = vmatprep.subr.mxu0 0.0
      %1229 = vmatpush1.xpose.msra.mxu0 0.0
      %1230 = vmatprep.subr.mxu0 0.0
      %1231 = vmatpush1.xpose.msra.mxu0 0.0
      %1232 = vmatprep.mubr.f32.mxu0 0.0
      %1233 = vmatmul.mubr.f32.gmra.mrb[0].mxu0 %v1164
      %v1234 = vpop.f32.mrb[0].mxu0
      %v1235 = vadd.f32 0.0, %v1234
      %v1236 = vpop.f32.mrb[0].mxu0
      %1237 = vdwg.mxu0
      %v1238 = vsel %vm401, %v1156, -inf
      %1239 = vmax.xlane.f32.xlu0 %v1238
      %v1240 = vpop.xlane.xlu0 %1239
      %v1241 = vsel %vm401, %v1235, -inf
      %1242 = vmax.xlane.f32.xlu0 %v1241
      %v1243 = vpop.xlane.xlu0 %1242
      %v1244 = vsub.f32 %v1156, %v1240
      %v1245 = vsub.f32 %v1235, %v1243
      %v1246 = vmul.f32 %v1244, 1.442695
      %v1247 = vpow.pop %v1246
      %v1248 = vmul.f32 %v1245, 1.442695
      %v1249 = vpow.pop %v1248
      %v1250 = vsel %vm401, %v1247, 0.0
      %1251 = vadd.xlane.f32.xlu0 %v1250
      %v1252 = vpop.xlane.xlu0 %1251
      %v1253 = vsel %vm401, %v1249, 0.0
      %1254 = vadd.xlane.f32.xlu0 %v1253
      %v1255 = vpop.xlane.xlu0 %1254
      %v1256 = vrcp.pop %v1252
      %v1257 = vrcp.pop %v1255
      %v1258 = vmul.f32 %v1247, %v1256
      %v1259 = vmul.f32 %v1249, %v1257
      %v1260 = vadd.f32 %v913, %v1258
      %v1261 = vadd.f32 %v914, %v1259
      %1262 = vrot.lane.b32.xlu0 %v1078, 64
      %v1263 = vpop.permute.xlu0 %1262
      %v1266 = vsel %vm401, %v1258, 0
      %1268 = vmatprep.subr.mxu0 0.0
      %1269 = vmatpush1.msra.mxu0 %v1263
      %1270 = vmatprep.subr.mxu0 0.0
      %1271 = vmatpush1.msra.mxu0 0.0
      %1272 = vmatprep.subr.mxu0 0.0
      %1273 = vmatpush1.msra.mxu0 0.0
      %1274 = vmatprep.subr.mxu0 0.0
      %1275 = vmatpush1.msra.mxu0 0.0
      %1276 = vmatprep.subr.mxu0 0.0
      %1277 = vmatpush1.msra.mxu0 0.0
      %1278 = vmatprep.subr.mxu0 0.0
      %1279 = vmatpush1.msra.mxu0 0.0
      %1280 = vmatprep.subr.mxu0 0.0
      %1281 = vmatpush1.msra.mxu0 0.0
      %1282 = vmatprep.subr.mxu0 0.0
      %1283 = vmatpush1.msra.mxu0 0.0
      %1284 = vmatprep.subr.mxu0 0.0
      %1285 = vmatpush1.msra.mxu0 0.0
      %1286 = vmatprep.subr.mxu0 0.0
      %1287 = vmatpush1.msra.mxu0 0.0
      %1288 = vmatprep.subr.mxu0 0.0
      %1289 = vmatpush1.msra.mxu0 0.0
      %1290 = vmatprep.subr.mxu0 0.0
      %1291 = vmatpush1.msra.mxu0 0.0
      %1292 = vmatprep.subr.mxu0 0.0
      %1293 = vmatpush1.msra.mxu0 0.0
      %1294 = vmatprep.subr.mxu0 0.0
      %1295 = vmatpush1.msra.mxu0 0.0
      %1296 = vmatprep.subr.mxu0 0.0
      %1297 = vmatpush1.msra.mxu0 0.0
      %1298 = vmatprep.subr.mxu0 0.0
      %1299 = vmatpush1.msra.mxu0 0.0
      %1300 = vmatprep.subr.mxu0 0.0
      %1301 = vmatpush1.msra.mxu0 0.0
      %1302 = vmatprep.subr.mxu0 0.0
      %1303 = vmatpush1.msra.mxu0 0.0
      %1304 = vmatprep.subr.mxu0 0.0
      %1305 = vmatpush1.msra.mxu0 0.0
      %1306 = vmatprep.subr.mxu0 0.0
      %1307 = vmatpush1.msra.mxu0 0.0
      %1308 = vmatprep.subr.mxu0 0.0
      %1309 = vmatpush1.msra.mxu0 0.0
      %1310 = vmatprep.subr.mxu0 0.0
      %1311 = vmatpush1.msra.mxu0 0.0
      %1312 = vmatprep.subr.mxu0 0.0
      %1313 = vmatpush1.msra.mxu0 0.0
      %1314 = vmatprep.subr.mxu0 0.0
      %1315 = vmatpush1.msra.mxu0 0.0
      %1316 = vmatprep.subr.mxu0 0.0
      %1317 = vmatpush1.msra.mxu0 0.0
      %1318 = vmatprep.subr.mxu0 0.0
      %1319 = vmatpush1.msra.mxu0 0.0
      %1320 = vmatprep.subr.mxu0 0.0
      %1321 = vmatpush1.msra.mxu0 0.0
      %1322 = vmatprep.subr.mxu0 0.0
      %1323 = vmatpush1.msra.mxu0 0.0
      %1324 = vmatprep.subr.mxu0 0.0
      %1325 = vmatpush1.msra.mxu0 0.0
      %1326 = vmatprep.subr.mxu0 0.0
      %1327 = vmatpush1.msra.mxu0 0.0
      %1328 = vmatprep.subr.mxu0 0.0
      %1329 = vmatpush1.msra.mxu0 0.0
      %1330 = vmatprep.subr.mxu0 0.0
      %1331 = vmatpush1.msra.mxu0 0.0
      %1332 = vmatprep.mubr.f32.mxu0 0.0
      %1333 = vmatmul.mubr.f32.gmra.mrb[0].mxu0 %v1266
      %v1334 = vpop.f32.mrb[0].mxu0
      %v1335 = vadd.f32 0.0, %v1334
      %v1336 = vpop.f32.mrb[0].mxu0
      %1337 = vdwg.mxu0
      %1338 = vrot.lane.b32.xlu0 %v1079, 64
      %v1339 = vpop.permute.xlu0 %1338
      %v1342 = vsel %vm401, %v1259, 0
      %1344 = vmatprep.subr.mxu0 0.0
      %1345 = vmatpush1.msra.mxu0 %v1339
      %1346 = vmatprep.subr.mxu0 0.0
      %1347 = vmatpush1.msra.mxu0 0.0
      %1348 = vmatprep.subr.mxu0 0.0
      %1349 = vmatpush1.msra.mxu0 0.0
      %1350 = vmatprep.subr.mxu0 0.0
      %1351 = vmatpush1.msra.mxu0 0.0
      %1352 = vmatprep.subr.mxu0 0.0
      %1353 = vmatpush1.msra.mxu0 0.0
      %1354 = vmatprep.subr.mxu0 0.0
      %1355 = vmatpush1.msra.mxu0 0.0
      %1356 = vmatprep.subr.mxu0 0.0
      %1357 = vmatpush1.msra.mxu0 0.0
      %1358 = vmatprep.subr.mxu0 0.0
      %1359 = vmatpush1.msra.mxu0 0.0
      %1360 = vmatprep.subr.mxu0 0.0
      %1361 = vmatpush1.msra.mxu0 0.0
      %1362 = vmatprep.subr.mxu0 0.0
      %1363 = vmatpush1.msra.mxu0 0.0
      %1364 = vmatprep.subr.mxu0 0.0
      %1365 = vmatpush1.msra.mxu0 0.0
      %1366 = vmatprep.subr.mxu0 0.0
      %1367 = vmatpush1.msra.mxu0 0.0
      %1368 = vmatprep.subr.mxu0 0.0
      %1369 = vmatpush1.msra.mxu0 0.0
      %1370 = vmatprep.subr.mxu0 0.0
      %1371 = vmatpush1.msra.mxu0 0.0
      %1372 = vmatprep.subr.mxu0 0.0
      %1373 = vmatpush1.msra.mxu0 0.0
      %1374 = vmatprep.subr.mxu0 0.0
      %1375 = vmatpush1.msra.mxu0 0.0
      %1376 = vmatprep.subr.mxu0 0.0
      %1377 = vmatpush1.msra.mxu0 0.0
      %1378 = vmatprep.subr.mxu0 0.0
      %1379 = vmatpush1.msra.mxu0 0.0
      %1380 = vmatprep.subr.mxu0 0.0
      %1381 = vmatpush1.msra.mxu0 0.0
      %1382 = vmatprep.subr.mxu0 0.0
      %1383 = vmatpush1.msra.mxu0 0.0
      %1384 = vmatprep.subr.mxu0 0.0
      %1385 = vmatpush1.msra.mxu0 0.0
      %1386 = vmatprep.subr.mxu0 0.0
      %1387 = vmatpush1.msra.mxu0 0.0
      %1388 = vmatprep.subr.mxu0 0.0
      %1389 = vmatpush1.msra.mxu0 0.0
      %1390 = vmatprep.subr.mxu0 0.0
      %1391 = vmatpush1.msra.mxu0 0.0
      %1392 = vmatprep.subr.mxu0 0.0
      %1393 = vmatpush1.msra.mxu0 0.0
      %1394 = vmatprep.subr.mxu0 0.0
      %1395 = vmatpush1.msra.mxu0 0.0
      %1396 = vmatprep.subr.mxu0 0.0
      %1397 = vmatpush1.msra.mxu0 0.0
      %1398 = vmatprep.subr.mxu0 0.0
      %1399 = vmatpush1.msra.mxu0 0.0
      %1400 = vmatprep.subr.mxu0 0.0
      %1401 = vmatpush1.msra.mxu0 0.0
      %1402 = vmatprep.subr.mxu0 0.0
      %1403 = vmatpush1.msra.mxu0 0.0
      %1404 = vmatprep.subr.mxu0 0.0
      %1405 = vmatpush1.msra.mxu0 0.0
      %1406 = vmatprep.subr.mxu0 0.0
      %1407 = vmatpush1.msra.mxu0 0.0
      %1408 = vmatprep.mubr.f32.mxu0 0.0
      %1409 = vmatmul.mubr.f32.gmra.mrb[0].mxu0 %v1342
      %v1410 = vpop.f32.mrb[0].mxu0
      %v1411 = vadd.f32 0.0, %v1410
      %v1412 = vpop.f32.mrb[0].mxu0
      %1413 = vdwg.mxu0
      %1416 = vrot.lane.b32.xlu0 %v1335, 16
      %v1417 = vpop.permute.xlu0 %1416
      %1418 = vrot.lane.b32.xlu0 %v1411, 16
      %v1419 = vpop.permute.xlu0 %1418
      %vm1422 = vcmask 195712
      %1423 = vst.msk [vmem:[#allocation3] sm:$0xff] %vm1422, %v1417
      %1424 = vst.msk [vmem:[#allocation3 + $0x8] sm:$0xff] %vm1422, %v1419
      %v1425 = vld [vmem:[#allocation2] sm:$0xff]
      %v1426 = vld [vmem:[#allocation2 + $0x8] sm:$0xff]
      %1428 = vrot.lane.b32.xlu0 %v1425, 56
      %v1429 = vpop.permute.xlu0 %1428
      %1430 = vrot.lane.b32.xlu0 %v1425, 48
      %v1431 = vpop.permute.xlu0 %1430
      %v1432 = vsel %vm401, %v1429, 0
      %v1434 = vsel %vm401, %v1431, 0
      %1436 = vmatprep.subr.mxu0 0.0
      %1437 = vmatpush1.xpose.msra.mxu0 %v1434
      %1438 = vmatprep.subr.mxu0 0.0
      %1439 = vmatpush1.xpose.msra.mxu0 0.0
      %1440 = vmatprep.subr.mxu0 0.0
      %1441 = vmatpush1.xpose.msra.mxu0 0.0
      %1442 = vmatprep.subr.mxu0 0.0
      %1443 = vmatpush1.xpose.msra.mxu0 0.0
      %1444 = vmatprep.subr.mxu0 0.0
      %1445 = vmatpush1.xpose.msra.mxu0 0.0
      %1446 = vmatprep.subr.mxu0 0.0
      %1447 = vmatpush1.xpose.msra.mxu0 0.0
      %1448 = vmatprep.subr.mxu0 0.0
      %1449 = vmatpush1.xpose.msra.mxu0 0.0
      %1450 = vmatprep.subr.mxu0 0.0
      %1451 = vmatpush1.xpose.msra.mxu0 0.0
      %1452 = vmatprep.subr.mxu0 0.0
      %1453 = vmatpush1.xpose.msra.mxu0 0.0
      %1454 = vmatprep.subr.mxu0 0.0
      %1455 = vmatpush1.xpose.msra.mxu0 0.0
      %1456 = vmatprep.subr.mxu0 0.0
      %1457 = vmatpush1.xpose.msra.mxu0 0.0
      %1458 = vmatprep.subr.mxu0 0.0
      %1459 = vmatpush1.xpose.msra.mxu0 0.0
      %1460 = vmatprep.subr.mxu0 0.0
      %1461 = vmatpush1.xpose.msra.mxu0 0.0
      %1462 = vmatprep.subr.mxu0 0.0
      %1463 = vmatpush1.xpose.msra.mxu0 0.0
      %1464 = vmatprep.subr.mxu0 0.0
      %1465 = vmatpush1.xpose.msra.mxu0 0.0
      %1466 = vmatprep.subr.mxu0 0.0
      %1467 = vmatpush1.xpose.msra.mxu0 0.0
      %1468 = vmatprep.subr.mxu0 0.0
      %1469 = vmatpush1.xpose.msra.mxu0 0.0
      %1470 = vmatprep.subr.mxu0 0.0
      %1471 = vmatpush1.xpose.msra.mxu0 0.0
      %1472 = vmatprep.subr.mxu0 0.0
      %1473 = vmatpush1.xpose.msra.mxu0 0.0
      %1474 = vmatprep.subr.mxu0 0.0
      %1475 = vmatpush1.xpose.msra.mxu0 0.0
      %1476 = vmatprep.subr.mxu0 0.0
      %1477 = vmatpush1.xpose.msra.mxu0 0.0
      %1478 = vmatprep.subr.mxu0 0.0
      %1479 = vmatpush1.xpose.msra.mxu0 0.0
      %1480 = vmatprep.subr.mxu0 0.0
      %1481 = vmatpush1.xpose.msra.mxu0 0.0
      %1482 = vmatprep.subr.mxu0 0.0
      %1483 = vmatpush1.xpose.msra.mxu0 0.0
      %1484 = vmatprep.subr.mxu0 0.0
      %1485 = vmatpush1.xpose.msra.mxu0 0.0
      %1486 = vmatprep.subr.mxu0 0.0
      %1487 = vmatpush1.xpose.msra.mxu0 0.0
      %1488 = vmatprep.subr.mxu0 0.0
      %1489 = vmatpush1.xpose.msra.mxu0 0.0
      %1490 = vmatprep.subr.mxu0 0.0
      %1491 = vmatpush1.xpose.msra.mxu0 0.0
      %1492 = vmatprep.subr.mxu0 0.0
      %1493 = vmatpush1.xpose.msra.mxu0 0.0
      %1494 = vmatprep.subr.mxu0 0.0
      %1495 = vmatpush1.xpose.msra.mxu0 0.0
      %1496 = vmatprep.subr.mxu0 0.0
      %1497 = vmatpush1.xpose.msra.mxu0 0.0
      %1498 = vmatprep.subr.mxu0 0.0
      %1499 = vmatpush1.xpose.msra.mxu0 0.0
      %1500 = vmatprep.mubr.f32.mxu0 0.0
      %1501 = vmatmul.mubr.f32.gmra.mrb[0].mxu0 %v1432
      %v1502 = vpop.f32.mrb[0].mxu0
      %v1503 = vadd.f32 0.0, %v1502
      %v1504 = vpop.f32.mrb[0].mxu0
      %1505 = vdwg.mxu0
      %1507 = vrot.lane.b32.xlu0 %v1426, 56
      %v1508 = vpop.permute.xlu0 %1507
      %1509 = vrot.lane.b32.xlu0 %v1426, 48
      %v1510 = vpop.permute.xlu0 %1509
      %v1511 = vsel %vm401, %v1508, 0
      %v1513 = vsel %vm401, %v1510, 0
      %1515 = vmatprep.subr.mxu0 0.0
      %1516 = vmatpush1.xpose.msra.mxu0 %v1513
      %1517 = vmatprep.subr.mxu0 0.0
      %1518 = vmatpush1.xpose.msra.mxu0 0.0
      %1519 = vmatprep.subr.mxu0 0.0
      %1520 = vmatpush1.xpose.msra.mxu0 0.0
      %1521 = vmatprep.subr.mxu0 0.0
      %1522 = vmatpush1.xpose.msra.mxu0 0.0
      %1523 = vmatprep.subr.mxu0 0.0
      %1524 = vmatpush1.xpose.msra.mxu0 0.0
      %1525 = vmatprep.subr.mxu0 0.0
      %1526 = vmatpush1.xpose.msra.mxu0 0.0
      %1527 = vmatprep.subr.mxu0 0.0
      %1528 = vmatpush1.xpose.msra.mxu0 0.0
      %1529 = vmatprep.subr.mxu0 0.0
      %1530 = vmatpush1.xpose.msra.mxu0 0.0
      %1531 = vmatprep.subr.mxu0 0.0
      %1532 = vmatpush1.xpose.msra.mxu0 0.0
      %1533 = vmatprep.subr.mxu0 0.0
      %1534 = vmatpush1.xpose.msra.mxu0 0.0
      %1535 = vmatprep.subr.mxu0 0.0
      %1536 = vmatpush1.xpose.msra.mxu0 0.0
      %1537 = vmatprep.subr.mxu0 0.0
      %1538 = vmatpush1.xpose.msra.mxu0 0.0
      %1539 = vmatprep.subr.mxu0 0.0
      %1540 = vmatpush1.xpose.msra.mxu0 0.0
      %1541 = vmatprep.subr.mxu0 0.0
      %1542 = vmatpush1.xpose.msra.mxu0 0.0
      %1543 = vmatprep.subr.mxu0 0.0
      %1544 = vmatpush1.xpose.msra.mxu0 0.0
      %1545 = vmatprep.subr.mxu0 0.0
      %1546 = vmatpush1.xpose.msra.mxu0 0.0
      %1547 = vmatprep.subr.mxu0 0.0
      %1548 = vmatpush1.xpose.msra.mxu0 0.0
      %1549 = vmatprep.subr.mxu0 0.0
      %1550 = vmatpush1.xpose.msra.mxu0 0.0
      %1551 = vmatprep.subr.mxu0 0.0
      %1552 = vmatpush1.xpose.msra.mxu0 0.0
      %1553 = vmatprep.subr.mxu0 0.0
      %1554 = vmatpush1.xpose.msra.mxu0 0.0
      %1555 = vmatprep.subr.mxu0 0.0
      %1556 = vmatpush1.xpose.msra.mxu0 0.0
      %1557 = vmatprep.subr.mxu0 0.0
      %1558 = vmatpush1.xpose.msra.mxu0 0.0
      %1559 = vmatprep.subr.mxu0 0.0
      %1560 = vmatpush1.xpose.msra.mxu0 0.0
      %1561 = vmatprep.subr.mxu0 0.0
      %1562 = vmatpush1.xpose.msra.mxu0 0.0
      %1563 = vmatprep.subr.mxu0 0.0
      %1564 = vmatpush1.xpose.msra.mxu0 0.0
      %1565 = vmatprep.subr.mxu0 0.0
      %1566 = vmatpush1.xpose.msra.mxu0 0.0
      %1567 = vmatprep.subr.mxu0 0.0
      %1568 = vmatpush1.xpose.msra.mxu0 0.0
      %1569 = vmatprep.subr.mxu0 0.0
      %1570 = vmatpush1.xpose.msra.mxu0 0.0
      %1571 = vmatprep.subr.mxu0 0.0
      %1572 = vmatpush1.xpose.msra.mxu0 0.0
      %1573 = vmatprep.subr.mxu0 0.0
      %1574 = vmatpush1.xpose.msra.mxu0 0.0
      %1575 = vmatprep.subr.mxu0 0.0
      %1576 = vmatpush1.xpose.msra.mxu0 0.0
      %1577 = vmatprep.subr.mxu0 0.0
      %1578 = vmatpush1.xpose.msra.mxu0 0.0
      %1579 = vmatprep.mubr.f32.mxu0 0.0
      %1580 = vmatmul.mubr.f32.gmra.mrb[0].mxu0 %v1511
      %v1581 = vpop.f32.mrb[0].mxu0
      %v1582 = vadd.f32 0.0, %v1581
      %v1583 = vpop.f32.mrb[0].mxu0
      %1584 = vdwg.mxu0
      %v1585 = vsel %vm401, %v1503, -inf
      %1586 = vmax.xlane.f32.xlu0 %v1585
      %v1587 = vpop.xlane.xlu0 %1586
      %v1588 = vsel %vm401, %v1582, -inf
      %1589 = vmax.xlane.f32.xlu0 %v1588
      %v1590 = vpop.xlane.xlu0 %1589
      %v1591 = vsub.f32 %v1503, %v1587
      %v1592 = vsub.f32 %v1582, %v1590
      %v1593 = vmul.f32 %v1591, 1.442695
      %v1594 = vpow.pop %v1593
      %v1595 = vmul.f32 %v1592, 1.442695
      %v1596 = vpow.pop %v1595
      %v1597 = vsel %vm401, %v1594, 0.0
      %1598 = vadd.xlane.f32.xlu0 %v1597
      %v1599 = vpop.xlane.xlu0 %1598
      %v1600 = vsel %vm401, %v1596, 0.0
      %1601 = vadd.xlane.f32.xlu0 %v1600
      %v1602 = vpop.xlane.xlu0 %1601
      %v1603 = vrcp.pop %v1599
      %v1604 = vrcp.pop %v1602
      %v1605 = vmul.f32 %v1594, %v1603
      %v1606 = vmul.f32 %v1596, %v1604
      %v1607 = vadd.f32 %v1260, %v1605
      %v1608 = vadd.f32 %v1261, %v1606
      %1609 = vrot.lane.b32.xlu0 %v1425, 40
      %v1610 = vpop.permute.xlu0 %1609
      %v1613 = vsel %vm401, %v1605, 0
      %1615 = vmatprep.subr.mxu0 0.0
      %1616 = vmatpush1.msra.mxu0 %v1610
      %1617 = vmatprep.subr.mxu0 0.0
      %1618 = vmatpush1.msra.mxu0 0.0
      %1619 = vmatprep.subr.mxu0 0.0
      %1620 = vmatpush1.msra.mxu0 0.0
      %1621 = vmatprep.subr.mxu0 0.0
      %1622 = vmatpush1.msra.mxu0 0.0
      %1623 = vmatprep.subr.mxu0 0.0
      %1624 = vmatpush1.msra.mxu0 0.0
      %1625 = vmatprep.subr.mxu0 0.0
      %1626 = vmatpush1.msra.mxu0 0.0
      %1627 = vmatprep.subr.mxu0 0.0
      %1628 = vmatpush1.msra.mxu0 0.0
      %1629 = vmatprep.subr.mxu0 0.0
      %1630 = vmatpush1.msra.mxu0 0.0
      %1631 = vmatprep.subr.mxu0 0.0
      %1632 = vmatpush1.msra.mxu0 0.0
      %1633 = vmatprep.subr.mxu0 0.0
      %1634 = vmatpush1.msra.mxu0 0.0
      %1635 = vmatprep.subr.mxu0 0.0
      %1636 = vmatpush1.msra.mxu0 0.0
      %1637 = vmatprep.subr.mxu0 0.0
      %1638 = vmatpush1.msra.mxu0 0.0
      %1639 = vmatprep.subr.mxu0 0.0
      %1640 = vmatpush1.msra.mxu0 0.0
      %1641 = vmatprep.subr.mxu0 0.0
      %1642 = vmatpush1.msra.mxu0 0.0
      %1643 = vmatprep.subr.mxu0 0.0
      %1644 = vmatpush1.msra.mxu0 0.0
      %1645 = vmatprep.subr.mxu0 0.0
      %1646 = vmatpush1.msra.mxu0 0.0
      %1647 = vmatprep.subr.mxu0 0.0
      %1648 = vmatpush1.msra.mxu0 0.0
      %1649 = vmatprep.subr.mxu0 0.0
      %1650 = vmatpush1.msra.mxu0 0.0
      %1651 = vmatprep.subr.mxu0 0.0
      %1652 = vmatpush1.msra.mxu0 0.0
      %1653 = vmatprep.subr.mxu0 0.0
      %1654 = vmatpush1.msra.mxu0 0.0
      %1655 = vmatprep.subr.mxu0 0.0
      %1656 = vmatpush1.msra.mxu0 0.0
      %1657 = vmatprep.subr.mxu0 0.0
      %1658 = vmatpush1.msra.mxu0 0.0
      %1659 = vmatprep.subr.mxu0 0.0
      %1660 = vmatpush1.msra.mxu0 0.0
      %1661 = vmatprep.subr.mxu0 0.0
      %1662 = vmatpush1.msra.mxu0 0.0
      %1663 = vmatprep.subr.mxu0 0.0
      %1664 = vmatpush1.msra.mxu0 0.0
      %1665 = vmatprep.subr.mxu0 0.0
      %1666 = vmatpush1.msra.mxu0 0.0
      %1667 = vmatprep.subr.mxu0 0.0
      %1668 = vmatpush1.msra.mxu0 0.0
      %1669 = vmatprep.subr.mxu0 0.0
      %1670 = vmatpush1.msra.mxu0 0.0
      %1671 = vmatprep.subr.mxu0 0.0
      %1672 = vmatpush1.msra.mxu0 0.0
      %1673 = vmatprep.subr.mxu0 0.0
      %1674 = vmatpush1.msra.mxu0 0.0
      %1675 = vmatprep.subr.mxu0 0.0
      %1676 = vmatpush1.msra.mxu0 0.0
      %1677 = vmatprep.subr.mxu0 0.0
      %1678 = vmatpush1.msra.mxu0 0.0
      %1679 = vmatprep.mubr.f32.mxu0 0.0
      %1680 = vmatmul.mubr.f32.gmra.mrb[0].mxu0 %v1613
      %v1681 = vpop.f32.mrb[0].mxu0
      %v1682 = vadd.f32 0.0, %v1681
      %v1683 = vpop.f32.mrb[0].mxu0
      %1684 = vdwg.mxu0
      %1685 = vrot.lane.b32.xlu0 %v1426, 40
      %v1686 = vpop.permute.xlu0 %1685
      %v1689 = vsel %vm401, %v1606, 0
      %1691 = vmatprep.subr.mxu0 0.0
      %1692 = vmatpush1.msra.mxu0 %v1686
      %1693 = vmatprep.subr.mxu0 0.0
      %1694 = vmatpush1.msra.mxu0 0.0
      %1695 = vmatprep.subr.mxu0 0.0
      %1696 = vmatpush1.msra.mxu0 0.0
      %1697 = vmatprep.subr.mxu0 0.0
      %1698 = vmatpush1.msra.mxu0 0.0
      %1699 = vmatprep.subr.mxu0 0.0
      %1700 = vmatpush1.msra.mxu0 0.0
      %1701 = vmatprep.subr.mxu0 0.0
      %1702 = vmatpush1.msra.mxu0 0.0
      %1703 = vmatprep.subr.mxu0 0.0
      %1704 = vmatpush1.msra.mxu0 0.0
      %1705 = vmatprep.subr.mxu0 0.0
      %1706 = vmatpush1.msra.mxu0 0.0
      %1707 = vmatprep.subr.mxu0 0.0
      %1708 = vmatpush1.msra.mxu0 0.0
      %1709 = vmatprep.subr.mxu0 0.0
      %1710 = vmatpush1.msra.mxu0 0.0
      %1711 = vmatprep.subr.mxu0 0.0
      %1712 = vmatpush1.msra.mxu0 0.0
      %1713 = vmatprep.subr.mxu0 0.0
      %1714 = vmatpush1.msra.mxu0 0.0
      %1715 = vmatprep.subr.mxu0 0.0
      %1716 = vmatpush1.msra.mxu0 0.0
      %1717 = vmatprep.subr.mxu0 0.0
      %1718 = vmatpush1.msra.mxu0 0.0
      %1719 = vmatprep.subr.mxu0 0.0
      %1720 = vmatpush1.msra.mxu0 0.0
      %1721 = vmatprep.subr.mxu0 0.0
      %1722 = vmatpush1.msra.mxu0 0.0
      %1723 = vmatprep.subr.mxu0 0.0
      %1724 = vmatpush1.msra.mxu0 0.0
      %1725 = vmatprep.subr.mxu0 0.0
      %1726 = vmatpush1.msra.mxu0 0.0
      %1727 = vmatprep.subr.mxu0 0.0
      %1728 = vmatpush1.msra.mxu0 0.0
      %1729 = vmatprep.subr.mxu0 0.0
      %1730 = vmatpush1.msra.mxu0 0.0
      %1731 = vmatprep.subr.mxu0 0.0
      %1732 = vmatpush1.msra.mxu0 0.0
      %1733 = vmatprep.subr.mxu0 0.0
      %1734 = vmatpush1.msra.mxu0 0.0
      %1735 = vmatprep.subr.mxu0 0.0
      %1736 = vmatpush1.msra.mxu0 0.0
      %1737 = vmatprep.subr.mxu0 0.0
      %1738 = vmatpush1.msra.mxu0 0.0
      %1739 = vmatprep.subr.mxu0 0.0
      %1740 = vmatpush1.msra.mxu0 0.0
      %1741 = vmatprep.subr.mxu0 0.0
      %1742 = vmatpush1.msra.mxu0 0.0
      %1743 = vmatprep.subr.mxu0 0.0
      %1744 = vmatpush1.msra.mxu0 0.0
      %1745 = vmatprep.subr.mxu0 0.0
      %1746 = vmatpush1.msra.mxu0 0.0
      %1747 = vmatprep.subr.mxu0 0.0
      %1748 = vmatpush1.msra.mxu0 0.0
      %1749 = vmatprep.subr.mxu0 0.0
      %1750 = vmatpush1.msra.mxu0 0.0
      %1751 = vmatprep.subr.mxu0 0.0
      %1752 = vmatpush1.msra.mxu0 0.0
      %1753 = vmatprep.subr.mxu0 0.0
      %1754 = vmatpush1.msra.mxu0 0.0
      %1755 = vmatprep.mubr.f32.mxu0 0.0
      %1756 = vmatmul.mubr.f32.gmra.mrb[0].mxu0 %v1689
      %v1757 = vpop.f32.mrb[0].mxu0
      %v1758 = vadd.f32 0.0, %v1757
      %v1759 = vpop.f32.mrb[0].mxu0
      %1760 = vdwg.mxu0
      %1763 = vrot.lane.b32.xlu0 %v1682, 24
      %v1764 = vpop.permute.xlu0 %1763
      %1765 = vrot.lane.b32.xlu0 %v1758, 24
      %v1766 = vpop.permute.xlu0 %1765
      %vm1769 = vcmask 261312
      %1770 = vst.msk [vmem:[#allocation3] sm:$0xff] %vm1769, %v1764
      %1771 = vst.msk [vmem:[#allocation3 + $0x8] sm:$0xff] %vm1769, %v1766
      %v1772 = vld [vmem:[#allocation3] sm:$0xff]
      %v1773 = vld [vmem:[#allocation3 + $0x8] sm:$0xff]
      %v1774 = vld [vmem:[%s3] sm:$0xff]
      %v1775 = vld [vmem:[%s3 + $0x8] sm:$0xff]
      %v1776 = vld [vmem:[%s3 + $0x10] sm:$0xff]
      %v1777 = vld [vmem:[%s3 + $0x18] sm:$0xff]
      %v1778 = vld [vmem:[%s4] sm:$0x1]
      %v1780 = vlaneseq
      %v1781 = vshrl.u32 %v1780, 7
      %v1782 = vsub.s32 0, %v1781
      %v1783 = vrot.slane %v1778, %v1782
      %v1786 = vsel %vm311, %v1772, 0
      %v1789 = vsel %vm311, %v1773, 0
      %1791 = vmatprep.subr.mxu0 0.0
      %1792 = vmatpush1.msra.mxu0 %v1774
      %1793 = vmatprep.subr.mxu0 0.0
      %1794 = vmatpush1.msra.mxu0 %v1775
      %1795 = vmatprep.subr.mxu0 0.0
      %1796 = vmatpush1.msra.mxu0 %v1776
      %1797 = vmatprep.subr.mxu0 0.0
      %1798 = vmatpush1.msra.mxu0 %v1777
      %1799 = vmatprep.subr.mxu0 0.0
      %1800 = vmatpush1.msra.mxu0 0.0
      %1801 = vmatprep.subr.mxu0 0.0
      %1802 = vmatpush1.msra.mxu0 0.0
      %1803 = vmatprep.subr.mxu0 0.0
      %1804 = vmatpush1.msra.mxu0 0.0
      %1805 = vmatprep.subr.mxu0 0.0
      %1806 = vmatpush1.msra.mxu0 0.0
      %1807 = vmatprep.subr.mxu0 0.0
      %1808 = vmatpush1.msra.mxu0 0.0
      %1809 = vmatprep.subr.mxu0 0.0
      %1810 = vmatpush1.msra.mxu0 0.0
      %1811 = vmatprep.subr.mxu0 0.0
      %1812 = vmatpush1.msra.mxu0 0.0
      %1813 = vmatprep.subr.mxu0 0.0
      %1814 = vmatpush1.msra.mxu0 0.0
      %1815 = vmatprep.subr.mxu0 0.0
      %1816 = vmatpush1.msra.mxu0 0.0
      %1817 = vmatprep.subr.mxu0 0.0
      %1818 = vmatpush1.msra.mxu0 0.0
      %1819 = vmatprep.subr.mxu0 0.0
      %1820 = vmatpush1.msra.mxu0 0.0
      %1821 = vmatprep.subr.mxu0 0.0
      %1822 = vmatpush1.msra.mxu0 0.0
      %1823 = vmatprep.subr.mxu0 0.0
      %1824 = vmatpush1.msra.mxu0 0.0
      %1825 = vmatprep.subr.mxu0 0.0
      %1826 = vmatpush1.msra.mxu0 0.0
      %1827 = vmatprep.subr.mxu0 0.0
      %1828 = vmatpush1.msra.mxu0 0.0
      %1829 = vmatprep.subr.mxu0 0.0
      %1830 = vmatpush1.msra.mxu0 0.0
      %1831 = vmatprep.subr.mxu0 0.0
      %1832 = vmatpush1.msra.mxu0 0.0
      %1833 = vmatprep.subr.mxu0 0.0
      %1834 = vmatpush1.msra.mxu0 0.0
      %1835 = vmatprep.subr.mxu0 0.0
      %1836 = vmatpush1.msra.mxu0 0.0
      %1837 = vmatprep.subr.mxu0 0.0
      %1838 = vmatpush1.msra.mxu0 0.0
      %1839 = vmatprep.subr.mxu0 0.0
      %1840 = vmatpush1.msra.mxu0 0.0
      %1841 = vmatprep.subr.mxu0 0.0
      %1842 = vmatpush1.msra.mxu0 0.0
      %1843 = vmatprep.subr.mxu0 0.0
      %1844 = vmatpush1.msra.mxu0 0.0
      %1845 = vmatprep.subr.mxu0 0.0
      %1846 = vmatpush1.msra.mxu0 0.0
      %1847 = vmatprep.subr.mxu0 0.0
      %1848 = vmatpush1.msra.mxu0 0.0
      %1849 = vmatprep.subr.mxu0 0.0
      %1850 = vmatpush1.msra.mxu0 0.0
      %1851 = vmatprep.subr.mxu0 0.0
      %1852 = vmatpush1.msra.mxu0 0.0
      %1853 = vmatprep.subr.mxu0 0.0
      %1854 = vmatpush1.msra.mxu0 0.0
      %1855 = vmatprep.mubr.f32.mxu0 0.0
      %1856 = vmatmul.mubr.f32.gmra.mrb[0].mxu0 %v1786
      %v1857 = vpop.f32.mrb[0].mxu0
      %v1858 = vadd.f32 %v1783, %v1857
      %v1859 = vpop.f32.mrb[0].mxu0
      %1860 = vmatprep.mubr.f32.mxu0 0.0
      %1861 = vmatmul.mubr.f32.gmra.mrb[0].mxu0 %v1789
      %v1862 = vpop.f32.mrb[0].mxu0
      %v1863 = vadd.f32 %v1783, %v1862
      %v1864 = vpop.f32.mrb[0].mxu0
      %1865 = vdwg.mxu0
      %1866 = vst.msk [vmem:[%s287] sm:$0xff] %vm311, %v1858
      %1867 = vst.msk [vmem:[%s287 + $0x8] sm:$0xff] %vm311, %v1863
      %v1868 = vmul.f32 %v1607, 0.25
      %v1869 = vmul.f32 %v1608, 0.25
      %1870 = vst.msk [vmem:[%s295] sm:$0xff] %vm401, %v1868
      %1871 = vst.msk [vmem:[%s295 + $0x8] sm:$0xff] %vm401, %v1869
      %s1872 = sadd.s32 %s22, %s23
      %s1873 = smul.u32 2, %s1872
      %p1874 = scmp.lt.s32.totalorder %s1873, 5
      %s1875 = scalar_select %p1874, %s1873, 5
      %s1876 = smul.addr %s1875, 8
      %s1877 = scalar_lea.vmem %s5, %s1876
      %s1878 = sadd.s32 %s22, %s23
      %s1879 = smul.u32 2, %s1878
      %p1880 = scmp.lt.s32.totalorder %s1879, 5
      %s1881 = scalar_select %p1880, %s1879, 5
      %s1882 = smul.addr %s1881, 8
      %s1883 = scalar_lea.vmem %s6, %s1882
      // Predicated region
      $region41: #{tpu_custom_call.1} parent=39 // pred_check
        %p1884 = pneg %p162
      $region42: #{tpu_custom_call.1} parent=39 // pred_check_branch
        %1886 = sbr.rel (%p1884) target = $region44
      $region43: #{tpu_custom_call.1} parent=39 // pred_region
        %s1887 = sadd.s32 %s22, %s23
        %s1888 = smul.u32 2, %s1887
      $region44: #{tpu_custom_call.1} parent=39 // pred_fallthru
        _
      // Predicated region
      $region45: #{tpu_custom_call.1} parent=39 // pred_check
        %p1889 = pneg %p190
      $region46: #{tpu_custom_call.1} parent=39 // pred_check_branch
        %1891 = sbr.rel (%p1889) target = $region48
      $region47: #{tpu_custom_call.1} parent=39 // pred_region
        %s1892 = sadd.s32 %s22, %s23
        %s1893 = smul.u32 2, %s1892
      $region48: #{tpu_custom_call.1} parent=39 // pred_fallthru
        _
    $region40: #{tpu_custom_call.1} parent=5 // pred_fallthru
      _
    %p1894 = scmp.le.s32.totalorder 2, %s13
    // Predicated region
    $region49: #{tpu_custom_call.1} parent=5 // pred_check
      %p1895 = pneg %p1894
    $region50: #{tpu_custom_call.1} parent=5 // pred_check_branch
      %1897 = sbr.rel (%p1895) target = $region52
    $region51: #{tpu_custom_call.1} parent=5 // pred_region
      %s1898 = ssub.s32 %s13, 2
      // Predicated region
      $region53: #{tpu_custom_call.1} parent=51 // pred_check
        %p1899 = pneg %p168
      $region54: #{tpu_custom_call.1} parent=51 // pred_check_branch
        %1901 = sbr.rel (%p1899) target = $region56
      $region55: #{tpu_custom_call.1} parent=51 // pred_region
        %s1902 = sadd.s32 %s24, %s25
        %s1903 = smul.u32 2, %s1902
        %p1904 = scmp.lt.s32.totalorder %s1903, 5
        %s1905 = scalar_select %p1904, %s1903, 5
        %s1906 = smul.addr %s1905, 8
        %s1907 = scalar_lea.vmem %s5, %s1906
      $region56: #{tpu_custom_call.1} parent=51 // pred_fallthru
        _
      // Predicated region
      $region57: #{tpu_custom_call.1} parent=51 // pred_check
        %p1908 = pneg %p196
      $region58: #{tpu_custom_call.1} parent=51 // pred_check_branch
        %1910 = sbr.rel (%p1908) target = $region60
      $region59: #{tpu_custom_call.1} parent=51 // pred_region
        %s1911 = sadd.s32 %s24, %s25
        %s1912 = smul.u32 2, %s1911
        %p1913 = scmp.lt.s32.totalorder %s1912, 5
        %s1914 = scalar_select %p1913, %s1912, 5
        %s1915 = smul.addr %s1914, 8
        %s1916 = scalar_lea.vmem %s6, %s1915
      $region60: #{tpu_custom_call.1} parent=51 // pred_fallthru
        _
    $region52: #{tpu_custom_call.1} parent=5 // pred_fallthru
      _
  $region6: #{tpu_custom_call.1} parent=0 // loop_footer
    %s17 = sadd.s32 1, %s13
  $region7: #{tpu_custom_call.1} parent=0 // loop_footer_branch
    %12 = sbr.rel target = $region3
  $region8: #{tpu_custom_call.1} parent=0 // loop_exit
    _

</llo_original>
